<compile_context>
chip_gen: v7x
topology: tpu7x:2x2x1
jax: 0.10.0
libtpu: 0.0.40
codegen_flags: <defaults>
</compile_context>

<pallas_src>
import jax
import jax.numpy as jnp
from jax.experimental import pallas as pl
from jax.experimental.pallas import tpu as pltpu


# ----------------------------- Pallas kernel --------------------------------
def bdq_kernel(x_ref, w1_ref, w2_ref, wh1_ref, wh2_ref, b_ref, q_ref):
    H1 = w1_ref.shape[1]          # 512
    H2 = w2_ref.shape[1]          # 256
    F1 = wh1_ref.shape[1]         # (ac_dim + 1) * 128
    NO = wh2_ref.shape[1]         # ac_dim * n

    # packed biases (static lane slices; all offsets are multiples of 128)
    b1  = b_ref[:, 0:H1]
    b2  = b_ref[:, H1:H1 + H2]
    bh1 = b_ref[:, H1 + H2:H1 + H2 + F1]
    bh2 = b_ref[:, H1 + H2 + F1:H1 + H2 + F1 + NO]

    # trunk: Linear(obs,512) -> ReLU -> Linear(512,256) -> ReLU
    x = x_ref[...].astype(jnp.bfloat16)
    h = jnp.dot(x, w1_ref[...], preferred_element_type=jnp.float32) + b1
    h = jnp.maximum(h, 0.0)                                            # (B, 512) f32
    h = jnp.dot(h.astype(jnp.bfloat16), w2_ref[...],
                preferred_element_type=jnp.float32) + b2
    h = jnp.maximum(h, 0.0)                                            # (B, 256) f32

    # fused heads, layer 1: [value | adv_0 | ... | adv_{k-1}] in one matmul
    u = jnp.dot(h.astype(jnp.bfloat16), wh1_ref[...],
                preferred_element_type=jnp.float32) + bh1
    u = jnp.maximum(u, 0.0)                                            # (B, (k+1)*128)

    # fused heads, layer 2: block-diagonal weight already contains the dueling
    # combine (value broadcast + (I - 1/n) centering), so this IS q, packed
    # lane-dense as (B, ac_dim*n).
    q_ref[...] = jnp.dot(u.astype(jnp.bfloat16), wh2_ref[...],
                         preferred_element_type=jnp.float32) + bh2


# ------------------------------- wrapper -------------------------------------
def branching_q_forward(x, packed, ac_dim, n):
    B = x.shape[0]
    vmem = pl.BlockSpec(memory_space=pltpu.MemorySpace.VMEM)
    args = (x, packed["w1"], packed["w2"], packed["wh1"], packed["wh2"], packed["b_all"])

    q_flat = pl.pallas_call(
        bdq_kernel,
        out_shape=jax.ShapeDtypeStruct((B, ac_dim * n), jnp.float32),
        in_specs=[vmem] * len(args),
        out_specs=vmem,
    )(*args)

    # free reshape (row-major split of the lane axis), no transpose needed
    return q_flat.reshape(B, ac_dim, n)


# --------------------------- parameter init ----------------------------------
def _init_linear(key, fan_in, fan_out):
    """PyTorch-style uniform(-1/sqrt(fan_in), 1/sqrt(fan_in)); W stored as (in, out)."""
    kw, kb = jax.random.split(key)
    bound = 1.0 / float(fan_in) ** 0.5
    w = jax.random.uniform(kw, (fan_in, fan_out), jnp.float32, -bound, bound)
    b = jax.random.uniform(kb, (1, fan_out), jnp.float32, -bound, bound)
    return w, b


def init_params(key, obs, ac_dim, n):
    """Unpacked f32 parameters (PyTorch-equivalent), used by the reference."""
    keys = jax.random.split(key, 4 + 2 * ac_dim)
    w1, b1 = _init_linear(keys[0], obs, 512)
    w2, b2 = _init_linear(keys[1], 512, 256)
    wv1, bv1 = _init_linear(keys[2], 256, 128)
    wv2, bv2 = _init_linear(keys[3], 128, 1)

    wa1_l, ba1_l, wa2_l, ba2_l = [], [], [], []
    for i in range(ac_dim):
        wa1, ba1 = _init_linear(keys[4 + 2 * i], 256, 128)
        wa2, ba2 = _init_linear(keys[5 + 2 * i], 128, n)
        wa1_l.append(wa1); ba1_l.append(ba1)
        wa2_l.append(wa2); ba2_l.append(ba2)

    return dict(
        w1=w1, b1=b1, w2=w2, b2=b2,
        wv1=wv1, bv1=bv1, wv2=wv2, bv2=bv2,
        wa1=jnp.stack(wa1_l, 0),   # (ac_dim, 256, 128)
        ba1=jnp.stack(ba1_l, 0),   # (ac_dim, 1, 128)
        wa2=jnp.stack(wa2_l, 0),   # (ac_dim, 128, n)
        ba2=jnp.stack(ba2_l, 0),   # (ac_dim, 1, n)
    )


def pack_params(p, ac_dim, n):
    """Fuse heads + fold the dueling combine into weights; cast weights to bf16."""
    hid = p["wv1"].shape[1]                        # 128
    F1 = (ac_dim + 1) * hid
    NO = ac_dim * n

    # head layer 1: [value | adv_0 | ... | adv_{ac_dim-1}]
    wh1 = jnp.concatenate([p["wv1"]] + [p["wa1"][i] for i in range(ac_dim)], axis=1)
    bh1 = jnp.concatenate([p["bv1"]] + [p["ba1"][i] for i in range(ac_dim)], axis=1)

    # centering matrix: (adv @ C) = adv - mean_n(adv)
    C = jnp.eye(n, dtype=jnp.float32) - jnp.full((n, n), 1.0 / n, jnp.float32)

    # head layer 2 (block-diagonal, with value broadcast + centering folded in)
    wh2 = jnp.zeros((F1, NO), jnp.float32)
    wh2 = wh2.at[0:hid, :].set(jnp.tile(p["wv2"], (1, NO)))          # value -> every q col
    bh2 = jnp.zeros((1, NO), jnp.float32) + p["bv2"][0, 0]
    for i in range(ac_dim):
        r0, r1 = hid * (i + 1), hid * (i + 2)
        c0, c1 = i * n, (i + 1) * n
        wh2 = wh2.at[r0:r1, c0:c1].set(p["wa2"][i] @ C)
        bh2 = bh2.at[:, c0:c1].add(p["ba2"][i] @ C)

    b_all = jnp.concatenate([p["b1"], p["b2"], bh1, bh2], axis=1)    # (1, 512+256+F1+NO)

    return dict(
        w1=p["w1"].astype(jnp.bfloat16),
        w2=p["w2"].astype(jnp.bfloat16),
        wh1=wh1.astype(jnp.bfloat16),
        wh2=wh2.astype(jnp.bfloat16),
        b_all=b_all,                               # biases stay f32
    )


# ------------------------- pure-JAX reference (f32) ---------------------------
def reference_forward(x, p):
    h = jnp.maximum(x @ p["w1"] + p["b1"], 0.0)
    h = jnp.maximum(h @ p["w2"] + p["b2"], 0.0)
    v = jnp.maximum(h @ p["wv1"] + p["bv1"], 0.0) @ p["wv2"] + p["bv2"]          # (B, 1)
    advs = []
    for i in range(p["wa1"].shape[0]):
        a = jnp.maximum(h @ p["wa1"][i] + p["ba1"][i], 0.0) @ p["wa2"][i] + p["ba2"][i]
        advs.append(a)
    advs = jnp.stack(advs, axis=1)                                               # (B, ac_dim, n)
    return v[:, :, None] + advs - advs.mean(axis=2, keepdims=True)


# --------------------------------- main ---------------------------------------
if __name__ == "__main__":
    obs, ac_dim, n, B = 32, 4, 8, 8

    key = jax.random.PRNGKey(0)
    k_params, k_x = jax.random.split(key)
    params = init_params(k_params, obs, ac_dim, n)
    packed = pack_params(params, ac_dim, n)
    x = jax.random.normal(k_x, (B, obs), jnp.float32)

    q = jax.block_until_ready(branching_q_forward(x, packed, ac_dim, n))
    q_ref = jax.block_until_ready(reference_forward(x, params))

    assert q.shape == (B, ac_dim, n)
    # weights are bf16 in the kernel -> loosened tolerance vs. the f32 reference
    assert jnp.allclose(q, q_ref, atol=5e-2, rtol=5e-2), "mismatch vs JAX reference"

    print("KERNEL_OK")
</pallas_src>

<mosaic_0001>
module attributes {stable_mosaic.version = 11 : i64} {
  func.func @bdq_kernel(%arg0: memref<8x32xf32, #tpu.memory_space<vmem>>, %arg1: memref<32x512xbf16, #tpu.memory_space<vmem>>, %arg2: memref<512x256xbf16, #tpu.memory_space<vmem>>, %arg3: memref<256x640xbf16, #tpu.memory_space<vmem>>, %arg4: memref<640x32xbf16, #tpu.memory_space<vmem>>, %arg5: memref<1x1440xf32, #tpu.memory_space<vmem>>, %arg6: memref<8x32xf32, #tpu.memory_space<vmem>>) attributes {dimension_semantics = [], scalar_prefetch = 0 : i64, scratch_operands = 0 : i64, tpu.core_type = #tpu.core_type<tc>} {
    %c0 = arith.constant 0 : index
    %c0_0 = arith.constant 0 : index
    %0 = vector.load %arg5[%c0, %c0_0] : memref<1x1440xf32, #tpu.memory_space<vmem>>, vector<1x512xf32>
    %c0_1 = arith.constant 0 : index
    %c512 = arith.constant 512 : index
    %1 = vector.load %arg5[%c0_1, %c512] : memref<1x1440xf32, #tpu.memory_space<vmem>>, vector<1x256xf32>
    %c0_2 = arith.constant 0 : index
    %c768 = arith.constant 768 : index
    %2 = vector.load %arg5[%c0_2, %c768] : memref<1x1440xf32, #tpu.memory_space<vmem>>, vector<1x640xf32>
    %c0_3 = arith.constant 0 : index
    %c1408 = arith.constant 1408 : index
    %3 = vector.load %arg5[%c0_3, %c1408] : memref<1x1440xf32, #tpu.memory_space<vmem>>, vector<1x32xf32>
    %c0_4 = arith.constant 0 : index
    %c0_5 = arith.constant 0 : index
    %4 = vector.load %arg0[%c0_4, %c0_5] : memref<8x32xf32, #tpu.memory_space<vmem>>, vector<8x32xf32>
    %5 = arith.truncf %4 : vector<8x32xf32> to vector<8x32xbf16>
    %c0_6 = arith.constant 0 : index
    %c0_7 = arith.constant 0 : index
    %6 = vector.load %arg1[%c0_6, %c0_7] : memref<32x512xbf16, #tpu.memory_space<vmem>>, vector<32x512xbf16>
    %cst = arith.constant dense<0.000000e+00> : vector<8x512xf32>
    %7 = tpu.matmul %5, %6, %cst {dimension_numbers = #tpu.dot_dimension_numbers<[1], [0], [0], [1], [0, 0, 1, 1], [], []>} : vector<8x32xbf16>, vector<32x512xbf16>, vector<8x512xf32> -> vector<8x512xf32>
    %8 = vector.broadcast %0 : vector<1x512xf32> to vector<8x512xf32>
    %9 = arith.addf %7, %8 : vector<8x512xf32>
    %cst_8 = arith.constant 0.000000e+00 : f32
    %10 = vector.broadcast %cst_8 : f32 to vector<8x512xf32>
    %11 = arith.maximumf %9, %10 : vector<8x512xf32>
    %12 = arith.truncf %11 : vector<8x512xf32> to vector<8x512xbf16>
    %c0_9 = arith.constant 0 : index
    %c0_10 = arith.constant 0 : index
    %13 = vector.load %arg2[%c0_9, %c0_10] : memref<512x256xbf16, #tpu.memory_space<vmem>>, vector<512x256xbf16>
    %cst_11 = arith.constant dense<0.000000e+00> : vector<8x256xf32>
    %14 = tpu.matmul %12, %13, %cst_11 {dimension_numbers = #tpu.dot_dimension_numbers<[1], [0], [0], [1], [0, 0, 1, 1], [], []>} : vector<8x512xbf16>, vector<512x256xbf16>, vector<8x256xf32> -> vector<8x256xf32>
    %15 = vector.broadcast %1 : vector<1x256xf32> to vector<8x256xf32>
    %16 = arith.addf %14, %15 : vector<8x256xf32>
    %cst_12 = arith.constant 0.000000e+00 : f32
    %17 = vector.broadcast %cst_12 : f32 to vector<8x256xf32>
    %18 = arith.maximumf %16, %17 : vector<8x256xf32>
    %19 = arith.truncf %18 : vector<8x256xf32> to vector<8x256xbf16>
    %c0_13 = arith.constant 0 : index
    %c0_14 = arith.constant 0 : index
    %20 = vector.load %arg3[%c0_13, %c0_14] : memref<256x640xbf16, #tpu.memory_space<vmem>>, vector<256x640xbf16>
    %cst_15 = arith.constant dense<0.000000e+00> : vector<8x640xf32>
    %21 = tpu.matmul %19, %20, %cst_15 {dimension_numbers = #tpu.dot_dimension_numbers<[1], [0], [0], [1], [0, 0, 1, 1], [], []>} : vector<8x256xbf16>, vector<256x640xbf16>, vector<8x640xf32> -> vector<8x640xf32>
    %22 = vector.broadcast %2 : vector<1x640xf32> to vector<8x640xf32>
    %23 = arith.addf %21, %22 : vector<8x640xf32>
    %cst_16 = arith.constant 0.000000e+00 : f32
    %24 = vector.broadcast %cst_16 : f32 to vector<8x640xf32>
    %25 = arith.maximumf %23, %24 : vector<8x640xf32>
    %26 = arith.truncf %25 : vector<8x640xf32> to vector<8x640xbf16>
    %c0_17 = arith.constant 0 : index
    %c0_18 = arith.constant 0 : index
    %27 = vector.load %arg4[%c0_17, %c0_18] : memref<640x32xbf16, #tpu.memory_space<vmem>>, vector<640x32xbf16>
    %cst_19 = arith.constant dense<0.000000e+00> : vector<8x32xf32>
    %28 = tpu.matmul %26, %27, %cst_19 {dimension_numbers = #tpu.dot_dimension_numbers<[1], [0], [0], [1], [0, 0, 1, 1], [], []>} : vector<8x640xbf16>, vector<640x32xbf16>, vector<8x32xf32> -> vector<8x32xf32>
    %29 = vector.broadcast %3 : vector<1x32xf32> to vector<8x32xf32>
    %30 = arith.addf %28, %29 : vector<8x32xf32>
    %c0_20 = arith.constant 0 : index
    %c0_21 = arith.constant 0 : index
    %31 = vector.load %arg6[%c0_20, %c0_21] : memref<8x32xf32, #tpu.memory_space<vmem>>, vector<8x32xf32>
    tpu.vector_store %arg6[%c0_20, %c0_21], %30 {strides = array<i32>} : memref<8x32xf32, #tpu.memory_space<vmem>>, vector<8x32xf32>,
    return
  }
}

</mosaic_0001>

<llo_original>
// kernel: tpu_custom_call.1
$region0: #{tpu_custom_call.1}
  #allocation0 [shape = 'u32[]', space=smem, size = 0x4, offset = 0x4, fixed_abs, tag = 'smem constant byte address 0x4 - core index']
  #allocation1 [shape = 'u32[144,128]{1,0:T(1,128)}', space=vmem, size = 0x12000, scoped, tag = 'internal scratch']
  %s0 = inlined_call_operand.vmem [shape: f32[8,32], index: 0, kind: input, shape index: {}]
  %s1 = inlined_call_operand.vmem [shape: bf16[32,512], index: 1, kind: input, shape index: {}]
  %s2 = inlined_call_operand.hbm [shape: bf16[512,256], index: 2, kind: input, shape index: {}]
  %s3 = inlined_call_operand.hbm [shape: bf16[256,640], index: 3, kind: input, shape index: {}]
  %s4 = inlined_call_operand.vmem [shape: bf16[640,32], index: 4, kind: input, shape index: {}]
  %s5 = inlined_call_operand.vmem [shape: f32[1,1440], index: 5, kind: input, shape index: {}]
  %s6 = inlined_call_operand.hbm [shape: f32[8,32], index: 6, kind: output, shape index: {}]
  %s7 = sld [smem:[#allocation0]]
  $region42: #{tpu_custom_call.1} parent=0
    _
  %s9 = ssub.s32 1, %s7
  %s10 = scalar_select 0, %s9, %s7
  $region1: #{tpu_custom_call.1} parent=0
    #allocation2 [shape = 'u8[262144]{0}', space=vmem, size = 0x40000, scoped, tag = 'input window, operand 2, single buffered']
    #allocation3 [shape = 's32[1]{0}', space=sflag, size = 0x4, scoped, tag = 'scoped memory for tpu_custom_call.1']
    #allocation4 [shape = 's32[1]{0}', space=sflag, size = 0x4, scoped, tag = 'scoped memory for tpu_custom_call.1']
    #allocation5 [shape = 'u8[327680]{0}', space=vmem, size = 0x50000, scoped, tag = 'input window, operand 3, single buffered']
    #allocation6 [shape = 's32[1]{0}', space=sflag, size = 0x4, scoped, tag = 'scoped memory for tpu_custom_call.1']
    #allocation7 [shape = 'u8[4096]{0}', space=vmem, size = 0x1000, scoped, tag = 'output window, operand 0, single buffered']
    %11 = vsyncpa [#allocation3], 0
    %12 = vsyncpa [#allocation6], 0
    %13 = vsyncpa [#allocation4], 0
    // Predicated region
    $region2: #{tpu_custom_call.1} parent=1 // pred_check
      _
    $region3: #{tpu_custom_call.1} parent=1 // pred_check_branch
      %15 = sbr.rel (0) target = $region5
    $region4: #{tpu_custom_call.1} parent=1 // pred_region
      _
    $region5: #{tpu_custom_call.1} parent=1 // pred_fallthru
      _
    // Predicated region
    $region6: #{tpu_custom_call.1} parent=1 // pred_check
      _
    $region7: #{tpu_custom_call.1} parent=1 // pred_check_branch
      %17 = sbr.rel (0) target = $region9
    $region8: #{tpu_custom_call.1} parent=1 // pred_region
      _
    $region9: #{tpu_custom_call.1} parent=1 // pred_fallthru
      _
    // Predicated region
    $region10: #{tpu_custom_call.1} parent=1 // pred_check
      _
    $region11: #{tpu_custom_call.1} parent=1 // pred_check_branch
      %19 = sbr.rel (0) target = $region13
    $region12: #{tpu_custom_call.1} parent=1 // pred_region
      %s21 = ssub.s32 8192, 8192
      %22 = vsyncadd [#allocation3], %s21
      %s23 = sshll.u32 [#allocation2], 4
      %s24 = int_to_ptr.vmem [resolvable:$true] %s23
      %29 = dma.hbm_to_vmem [thread:$0]  %s2, 8192, %s24, [#allocation3], 128, 128, 8
    $region13: #{tpu_custom_call.1} parent=1 // pred_fallthru
      _
    // Predicated region
    $region14: #{tpu_custom_call.1} parent=1 // pred_check
      _
    $region15: #{tpu_custom_call.1} parent=1 // pred_check_branch
      %31 = sbr.rel (0) target = $region17
    $region16: #{tpu_custom_call.1} parent=1 // pred_region
      %s33 = ssub.s32 10240, 10240
      %34 = vsyncadd [#allocation6], %s33
      %s35 = sshll.u32 [#allocation5], 4
      %s36 = int_to_ptr.vmem [resolvable:$true] %s35
      %41 = dma.hbm_to_vmem [thread:$0]  %s3, 10240, %s36, [#allocation6], 320, 320, 20
    $region17: #{tpu_custom_call.1} parent=1 // pred_fallthru
      _
    // Predicated region
    $region18: #{tpu_custom_call.1} parent=1 // pred_check
      _
    $region19: #{tpu_custom_call.1} parent=1 // pred_check_branch
      %43 = sbr.rel (0) target = $region21
    $region20: #{tpu_custom_call.1} parent=1 // pred_region
      _
    $region21: #{tpu_custom_call.1} parent=1 // pred_fallthru
      _
    // Predicated region
    $region22: #{tpu_custom_call.1} parent=1 // pred_check
      _
    $region23: #{tpu_custom_call.1} parent=1 // pred_check_branch
      %45 = sbr.rel (0) target = $region25
    $region24: #{tpu_custom_call.1} parent=1 // pred_region
      _
    $region25: #{tpu_custom_call.1} parent=1 // pred_fallthru
      _
    // Predicated region
    $region26: #{tpu_custom_call.1} parent=1 // pred_check
      _
    $region27: #{tpu_custom_call.1} parent=1 // pred_check_branch
      %47 = sbr.rel (0) target = $region29
    $region28: #{tpu_custom_call.1} parent=1 // pred_region
      %48 = dma.done [#allocation3], 8192
    $region29: #{tpu_custom_call.1} parent=1 // pred_fallthru
      _
    // Predicated region
    $region30: #{tpu_custom_call.1} parent=1 // pred_check
      _
    $region31: #{tpu_custom_call.1} parent=1 // pred_check_branch
      %50 = sbr.rel (0) target = $region33
    $region32: #{tpu_custom_call.1} parent=1 // pred_region
      %51 = dma.done [#allocation6], 10240
    $region33: #{tpu_custom_call.1} parent=1 // pred_fallthru
      _
    %v53 = vld [vmem:[%s5] sm:$0xf]
    %v54 = vld [vmem:[%s5 + $0x4] sm:$0x3]
    %v55 = vld [vmem:[%s5 + $0x6] sm:$0x1f]
    %v56 = vld [vmem:[%s5 + $0xb] sm:$0x1]
    %v57 = vld [vmem:[%s0] sm:$0xff]
    %v58 = vpack.c.bf16 %v57, %v57
    %v59 = vld [vmem:[%s1] sm:$0xff]
    %v60 = vld [vmem:[%s1 + $0x8] sm:$0xff]
    %v61 = vld [vmem:[%s1 + $0x10] sm:$0xff]
    %v62 = vld [vmem:[%s1 + $0x18] sm:$0xff]
    %v63 = vld [vmem:[%s1 + $0x20] sm:$0xff]
    %v64 = vld [vmem:[%s1 + $0x28] sm:$0xff]
    %v65 = vld [vmem:[%s1 + $0x30] sm:$0xff]
    %v66 = vld [vmem:[%s1 + $0x38] sm:$0xff]
    %v68 = vlaneseq
    %v69 = vshrl.u32 %v68, 7
    %v70 = vsub.s32 0, %v69
    %v71 = vrot.slane %v53, %v70
    %v72 = vlaneseq
    %v73 = vshrl.u32 %v72, 7
    %v74 = vsub.s32 1, %v73
    %v75 = vrot.slane %v53, %v74
    %v76 = vlaneseq
    %v77 = vshrl.u32 %v76, 7
    %v78 = vsub.s32 2, %v77
    %v79 = vrot.slane %v53, %v78
    %v80 = vlaneseq
    %v81 = vshrl.u32 %v80, 7
    %v82 = vsub.s32 3, %v81
    %v83 = vrot.slane %v53, %v82
    %v96 = vunpack.c.l.b16 %v59
    %v97 = vunpack.c.h.b16 %v59
    %v98 = vunpack.c.l.b16 %v60
    %v99 = vunpack.c.h.b16 %v60
    %v100 = vunpack.c.l.b16 %v61
    %v101 = vunpack.c.h.b16 %v61
    %v102 = vunpack.c.l.b16 %v62
    %v103 = vunpack.c.h.b16 %v62
    %v104 = vunpack.c.l.b16 %v63
    %v105 = vunpack.c.h.b16 %v63
    %v106 = vunpack.c.l.b16 %v64
    %v107 = vunpack.c.h.b16 %v64
    %v108 = vunpack.c.l.b16 %v65
    %v109 = vunpack.c.h.b16 %v65
    %v110 = vunpack.c.l.b16 %v66
    %v111 = vunpack.c.h.b16 %v66
    %v112 = vpack.c.b16 %v100, %v96
    %v113 = vpack.c.b16 %v101, %v97
    %v114 = vpack.c.b16 %v102, %v98
    %v115 = vpack.c.b16 %v103, %v99
    %v116 = vpack.c.b16 %v108, %v104
    %v117 = vpack.c.b16 %v109, %v105
    %v118 = vpack.c.b16 %v110, %v106
    %v119 = vpack.c.b16 %v111, %v107
    %vm128 = vcmask 261120
    %v130 = vsel %vm128, %v58, 0
    %132 = vmatprep.subr.bf16.mxu0 %v113
    %133 = vmatpush1.bf16.msra.mxu0 %v112
    %134 = vmatprep.subr.bf16.mxu0 %v117
    %135 = vmatpush1.bf16.msra.mxu0 %v116
    %136 = vmatprep.subr.bf16.mxu0 0
    %137 = vmatpush1.bf16.msra.mxu0 0
    %138 = vmatprep.subr.bf16.mxu0 0
    %139 = vmatpush1.bf16.msra.mxu0 0
    %140 = vmatprep.subr.bf16.mxu0 0
    %141 = vmatpush1.bf16.msra.mxu0 0
    %142 = vmatprep.subr.bf16.mxu0 0
    %143 = vmatpush1.bf16.msra.mxu0 0
    %144 = vmatprep.subr.bf16.mxu0 0
    %145 = vmatpush1.bf16.msra.mxu0 0
    %146 = vmatprep.subr.bf16.mxu0 0
    %147 = vmatpush1.bf16.msra.mxu0 0
    %148 = vmatprep.subr.bf16.mxu0 0
    %149 = vmatpush1.bf16.msra.mxu0 0
    %150 = vmatprep.subr.bf16.mxu0 0
    %151 = vmatpush1.bf16.msra.mxu0 0
    %152 = vmatprep.subr.bf16.mxu0 0
    %153 = vmatpush1.bf16.msra.mxu0 0
    %154 = vmatprep.subr.bf16.mxu0 0
    %155 = vmatpush1.bf16.msra.mxu0 0
    %156 = vmatprep.subr.bf16.mxu0 0
    %157 = vmatpush1.bf16.msra.mxu0 0
    %158 = vmatprep.subr.bf16.mxu0 0
    %159 = vmatpush1.bf16.msra.mxu0 0
    %160 = vmatprep.subr.bf16.mxu0 0
    %161 = vmatpush1.bf16.msra.mxu0 0
    %162 = vmatprep.subr.bf16.mxu0 0
    %163 = vmatpush1.bf16.msra.mxu0 0
    %164 = vmatprep.mubr.bf16.mxu0 0
    %165 = vmatmul.mubr.bf16.gmra.mrb[0].mxu0 %v130
    %v166 = vpop.f32.mrb[0].mxu0
    %v167 = vadd.f32 %v71, %v166
    %v168 = vpop.f32.mrb[0].mxu0
    %v169 = vadd.f32 %v75, %v168
    %v170 = vpop.f32.mrb[0].mxu0
    %v171 = vpop.f32.mrb[0].mxu0
    %172 = vdwg.mxu0
    %173 = vmatprep.subr.bf16.mxu0 %v115
    %174 = vmatpush1.bf16.msra.mxu0 %v114
    %175 = vmatprep.subr.bf16.mxu0 %v119
    %176 = vmatpush1.bf16.msra.mxu0 %v118
    %177 = vmatprep.subr.bf16.mxu0 0
    %178 = vmatpush1.bf16.msra.mxu0 0
    %179 = vmatprep.subr.bf16.mxu0 0
    %180 = vmatpush1.bf16.msra.mxu0 0
    %181 = vmatprep.subr.bf16.mxu0 0
    %182 = vmatpush1.bf16.msra.mxu0 0
    %183 = vmatprep.subr.bf16.mxu0 0
    %184 = vmatpush1.bf16.msra.mxu0 0
    %185 = vmatprep.subr.bf16.mxu0 0
    %186 = vmatpush1.bf16.msra.mxu0 0
    %187 = vmatprep.subr.bf16.mxu0 0
    %188 = vmatpush1.bf16.msra.mxu0 0
    %189 = vmatprep.subr.bf16.mxu0 0
    %190 = vmatpush1.bf16.msra.mxu0 0
    %191 = vmatprep.subr.bf16.mxu0 0
    %192 = vmatpush1.bf16.msra.mxu0 0
    %193 = vmatprep.subr.bf16.mxu0 0
    %194 = vmatpush1.bf16.msra.mxu0 0
    %195 = vmatprep.subr.bf16.mxu0 0
    %196 = vmatpush1.bf16.msra.mxu0 0
    %197 = vmatprep.subr.bf16.mxu0 0
    %198 = vmatpush1.bf16.msra.mxu0 0
    %199 = vmatprep.subr.bf16.mxu0 0
    %200 = vmatpush1.bf16.msra.mxu0 0
    %201 = vmatprep.subr.bf16.mxu0 0
    %202 = vmatpush1.bf16.msra.mxu0 0
    %203 = vmatprep.subr.bf16.mxu0 0
    %204 = vmatpush1.bf16.msra.mxu0 0
    %205 = vmatprep.mubr.bf16.mxu0 0
    %206 = vmatmul.mubr.bf16.gmra.mrb[0].mxu0 %v130
    %v207 = vpop.f32.mrb[0].mxu0
    %v208 = vadd.f32 %v79, %v207
    %v209 = vpop.f32.mrb[0].mxu0
    %v210 = vadd.f32 %v83, %v209
    %v211 = vpop.f32.mrb[0].mxu0
    %v212 = vpop.f32.mrb[0].mxu0
    %213 = vdwg.mxu0
    %v214 = vmax.f32 %v167, 0.0
    %v215 = vmax.f32 %v169, 0.0
    %v216 = vmax.f32 %v208, 0.0
    %v217 = vmax.f32 %v210, 0.0
    %v218 = vpack.c.bf16 %v214, %v214
    %v219 = vpack.c.bf16 %v215, %v215
    %v220 = vpack.c.bf16 %v216, %v216
    %v221 = vpack.c.bf16 %v217, %v217
    %v222 = vld [vmem:[#allocation2] sm:$0xff]
    %v223 = vld [vmem:[#allocation2 + $0x8] sm:$0xff]
    %v224 = vld [vmem:[#allocation2 + $0x10] sm:$0xff]
    %v225 = vld [vmem:[#allocation2 + $0x18] sm:$0xff]
    %v226 = vld [vmem:[#allocation2 + $0x20] sm:$0xff]
    %v227 = vld [vmem:[#allocation2 + $0x28] sm:$0xff]
    %v228 = vld [vmem:[#allocation2 + $0x30] sm:$0xff]
    %v229 = vld [vmem:[#allocation2 + $0x38] sm:$0xff]
    %v230 = vld [vmem:[#allocation2 + $0x40] sm:$0xff]
    %v231 = vld [vmem:[#allocation2 + $0x48] sm:$0xff]
    %v232 = vld [vmem:[#allocation2 + $0x50] sm:$0xff]
    %v233 = vld [vmem:[#allocation2 + $0x58] sm:$0xff]
    %v234 = vld [vmem:[#allocation2 + $0x60] sm:$0xff]
    %v235 = vld [vmem:[#allocation2 + $0x68] sm:$0xff]
    %v236 = vld [vmem:[#allocation2 + $0x70] sm:$0xff]
    %v237 = vld [vmem:[#allocation2 + $0x78] sm:$0xff]
    %v238 = vld [vmem:[#allocation2 + $0x80] sm:$0xff]
    %v239 = vld [vmem:[#allocation2 + $0x88] sm:$0xff]
    %v240 = vld [vmem:[#allocation2 + $0x90] sm:$0xff]
    %v241 = vld [vmem:[#allocation2 + $0x98] sm:$0xff]
    %v242 = vld [vmem:[#allocation2 + $0xa0] sm:$0xff]
    %v243 = vld [vmem:[#allocation2 + $0xa8] sm:$0xff]
    %v244 = vld [vmem:[#allocation2 + $0xb0] sm:$0xff]
    %v245 = vld [vmem:[#allocation2 + $0xb8] sm:$0xff]
    %v246 = vld [vmem:[#allocation2 + $0xc0] sm:$0xff]
    %v247 = vld [vmem:[#allocation2 + $0xc8] sm:$0xff]
    %v248 = vld [vmem:[#allocation2 + $0xd0] sm:$0xff]
    %v249 = vld [vmem:[#allocation2 + $0xd8] sm:$0xff]
    %v250 = vld [vmem:[#allocation2 + $0xe0] sm:$0xff]
    %v251 = vld [vmem:[#allocation2 + $0xe8] sm:$0xff]
    %v252 = vld [vmem:[#allocation2 + $0xf0] sm:$0xff]
    %v253 = vld [vmem:[#allocation2 + $0xf8] sm:$0xff]
    %v254 = vld [vmem:[#allocation2 + $0x100] sm:$0xff]
    %v255 = vld [vmem:[#allocation2 + $0x108] sm:$0xff]
    %v256 = vld [vmem:[#allocation2 + $0x110] sm:$0xff]
    %v257 = vld [vmem:[#allocation2 + $0x118] sm:$0xff]
    %v258 = vld [vmem:[#allocation2 + $0x120] sm:$0xff]
    %v259 = vld [vmem:[#allocation2 + $0x128] sm:$0xff]
    %v260 = vld [vmem:[#allocation2 + $0x130] sm:$0xff]
    %v261 = vld [vmem:[#allocation2 + $0x138] sm:$0xff]
    %v262 = vld [vmem:[#allocation2 + $0x140] sm:$0xff]
    %v263 = vld [vmem:[#allocation2 + $0x148] sm:$0xff]
    %v264 = vld [vmem:[#allocation2 + $0x150] sm:$0xff]
    %v265 = vld [vmem:[#allocation2 + $0x158] sm:$0xff]
    %v266 = vld [vmem:[#allocation2 + $0x160] sm:$0xff]
    %v267 = vld [vmem:[#allocation2 + $0x168] sm:$0xff]
    %v268 = vld [vmem:[#allocation2 + $0x170] sm:$0xff]
    %v269 = vld [vmem:[#allocation2 + $0x178] sm:$0xff]
    %v270 = vld [vmem:[#allocation2 + $0x180] sm:$0xff]
    %v271 = vld [vmem:[#allocation2 + $0x188] sm:$0xff]
    %v272 = vld [vmem:[#allocation2 + $0x190] sm:$0xff]
    %v273 = vld [vmem:[#allocation2 + $0x198] sm:$0xff]
    %v274 = vld [vmem:[#allocation2 + $0x1a0] sm:$0xff]
    %v275 = vld [vmem:[#allocation2 + $0x1a8] sm:$0xff]
    %v276 = vld [vmem:[#allocation2 + $0x1b0] sm:$0xff]
    %v277 = vld [vmem:[#allocation2 + $0x1b8] sm:$0xff]
    %v278 = vld [vmem:[#allocation2 + $0x1c0] sm:$0xff]
    %v279 = vld [vmem:[#allocation2 + $0x1c8] sm:$0xff]
    %v280 = vld [vmem:[#allocation2 + $0x1d0] sm:$0xff]
    %v281 = vld [vmem:[#allocation2 + $0x1d8] sm:$0xff]
    %v282 = vld [vmem:[#allocation2 + $0x1e0] sm:$0xff]
    %v283 = vld [vmem:[#allocation2 + $0x1e8] sm:$0xff]
    %v284 = vld [vmem:[#allocation2 + $0x1f0] sm:$0xff]
    %v285 = vld [vmem:[#allocation2 + $0x1f8] sm:$0xff]
    %v287 = vlaneseq
    %v288 = vshrl.u32 %v287, 7
    %v289 = vsub.s32 0, %v288
    %v290 = vrot.slane %v54, %v289
    %v291 = vlaneseq
    %v292 = vshrl.u32 %v291, 7
    %v293 = vsub.s32 1, %v292
    %v294 = vrot.slane %v54, %v293
    %v361 = vunpack.c.l.b16 %v222
    %v362 = vunpack.c.h.b16 %v222
    %v363 = vunpack.c.l.b16 %v223
    %v364 = vunpack.c.h.b16 %v223
    %v365 = vunpack.c.l.b16 %v224
    %v366 = vunpack.c.h.b16 %v224
    %v367 = vunpack.c.l.b16 %v225
    %v368 = vunpack.c.h.b16 %v225
    %v369 = vunpack.c.l.b16 %v226
    %v370 = vunpack.c.h.b16 %v226
    %v371 = vunpack.c.l.b16 %v227
    %v372 = vunpack.c.h.b16 %v227
    %v373 = vunpack.c.l.b16 %v228
    %v374 = vunpack.c.h.b16 %v228
    %v375 = vunpack.c.l.b16 %v229
    %v376 = vunpack.c.h.b16 %v229
    %v377 = vunpack.c.l.b16 %v230
    %v378 = vunpack.c.h.b16 %v230
    %v379 = vunpack.c.l.b16 %v231
    %v380 = vunpack.c.h.b16 %v231
    %v381 = vunpack.c.l.b16 %v232
    %v382 = vunpack.c.h.b16 %v232
    %v383 = vunpack.c.l.b16 %v233
    %v384 = vunpack.c.h.b16 %v233
    %v385 = vunpack.c.l.b16 %v234
    %v386 = vunpack.c.h.b16 %v234
    %v387 = vunpack.c.l.b16 %v235
    %v388 = vunpack.c.h.b16 %v235
    %v389 = vunpack.c.l.b16 %v236
    %v390 = vunpack.c.h.b16 %v236
    %v391 = vunpack.c.l.b16 %v237
    %v392 = vunpack.c.h.b16 %v237
    %v393 = vunpack.c.l.b16 %v238
    %v394 = vunpack.c.h.b16 %v238
    %v395 = vunpack.c.l.b16 %v239
    %v396 = vunpack.c.h.b16 %v239
    %v397 = vunpack.c.l.b16 %v240
    %v398 = vunpack.c.h.b16 %v240
    %v399 = vunpack.c.l.b16 %v241
    %v400 = vunpack.c.h.b16 %v241
    %v401 = vunpack.c.l.b16 %v242
    %v402 = vunpack.c.h.b16 %v242
    %v403 = vunpack.c.l.b16 %v243
    %v404 = vunpack.c.h.b16 %v243
    %v405 = vunpack.c.l.b16 %v244
    %v406 = vunpack.c.h.b16 %v244
    %v407 = vunpack.c.l.b16 %v245
    %v408 = vunpack.c.h.b16 %v245
    %v409 = vunpack.c.l.b16 %v246
    %v410 = vunpack.c.h.b16 %v246
    %v411 = vunpack.c.l.b16 %v247
    %v412 = vunpack.c.h.b16 %v247
    %v413 = vunpack.c.l.b16 %v248
    %v414 = vunpack.c.h.b16 %v248
    %v415 = vunpack.c.l.b16 %v249
    %v416 = vunpack.c.h.b16 %v249
    %v417 = vunpack.c.l.b16 %v250
    %v418 = vunpack.c.h.b16 %v250
    %v419 = vunpack.c.l.b16 %v251
    %v420 = vunpack.c.h.b16 %v251
    %v421 = vunpack.c.l.b16 %v252
    %v422 = vunpack.c.h.b16 %v252
    %v423 = vunpack.c.l.b16 %v253
    %v424 = vunpack.c.h.b16 %v253
    %v425 = vunpack.c.l.b16 %v254
    %v426 = vunpack.c.h.b16 %v254
    %v427 = vunpack.c.l.b16 %v255
    %v428 = vunpack.c.h.b16 %v255
    %v429 = vunpack.c.l.b16 %v256
    %v430 = vunpack.c.h.b16 %v256
    %v431 = vunpack.c.l.b16 %v257
    %v432 = vunpack.c.h.b16 %v257
    %v433 = vunpack.c.l.b16 %v258
    %v434 = vunpack.c.h.b16 %v258
    %v435 = vunpack.c.l.b16 %v259
    %v436 = vunpack.c.h.b16 %v259
    %v437 = vunpack.c.l.b16 %v260
    %v438 = vunpack.c.h.b16 %v260
    %v439 = vunpack.c.l.b16 %v261
    %v440 = vunpack.c.h.b16 %v261
    %v441 = vunpack.c.l.b16 %v262
    %v442 = vunpack.c.h.b16 %v262
    %v443 = vunpack.c.l.b16 %v263
    %v444 = vunpack.c.h.b16 %v263
    %v445 = vunpack.c.l.b16 %v264
    %v446 = vunpack.c.h.b16 %v264
    %v447 = vunpack.c.l.b16 %v265
    %v448 = vunpack.c.h.b16 %v265
    %v449 = vunpack.c.l.b16 %v266
    %v450 = vunpack.c.h.b16 %v266
    %v451 = vunpack.c.l.b16 %v267
    %v452 = vunpack.c.h.b16 %v267
    %v453 = vunpack.c.l.b16 %v268
    %v454 = vunpack.c.h.b16 %v268
    %v455 = vunpack.c.l.b16 %v269
    %v456 = vunpack.c.h.b16 %v269
    %v457 = vunpack.c.l.b16 %v270
    %v458 = vunpack.c.h.b16 %v270
    %v459 = vunpack.c.l.b16 %v271
    %v460 = vunpack.c.h.b16 %v271
    %v461 = vunpack.c.l.b16 %v272
    %v462 = vunpack.c.h.b16 %v272
    %v463 = vunpack.c.l.b16 %v273
    %v464 = vunpack.c.h.b16 %v273
    %v465 = vunpack.c.l.b16 %v274
    %v466 = vunpack.c.h.b16 %v274
    %v467 = vunpack.c.l.b16 %v275
    %v468 = vunpack.c.h.b16 %v275
    %v469 = vunpack.c.l.b16 %v276
    %v470 = vunpack.c.h.b16 %v276
    %v471 = vunpack.c.l.b16 %v277
    %v472 = vunpack.c.h.b16 %v277
    %v473 = vunpack.c.l.b16 %v278
    %v474 = vunpack.c.h.b16 %v278
    %v475 = vunpack.c.l.b16 %v279
    %v476 = vunpack.c.h.b16 %v279
    %v477 = vunpack.c.l.b16 %v280
    %v478 = vunpack.c.h.b16 %v280
    %v479 = vunpack.c.l.b16 %v281
    %v480 = vunpack.c.h.b16 %v281
    %v481 = vunpack.c.l.b16 %v282
    %v482 = vunpack.c.h.b16 %v282
    %v483 = vunpack.c.l.b16 %v283
    %v484 = vunpack.c.h.b16 %v283
    %v485 = vunpack.c.l.b16 %v284
    %v486 = vunpack.c.h.b16 %v284
    %v487 = vunpack.c.l.b16 %v285
    %v488 = vunpack.c.h.b16 %v285
    %v489 = vpack.c.b16 %v363, %v361
    %v490 = vpack.c.b16 %v364, %v362
    %v491 = vpack.c.b16 %v367, %v365
    %v492 = vpack.c.b16 %v368, %v366
    %v493 = vpack.c.b16 %v371, %v369
    %v494 = vpack.c.b16 %v372, %v370
    %v495 = vpack.c.b16 %v375, %v373
    %v496 = vpack.c.b16 %v376, %v374
    %v497 = vpack.c.b16 %v379, %v377
    %v498 = vpack.c.b16 %v380, %v378
    %v499 = vpack.c.b16 %v383, %v381
    %v500 = vpack.c.b16 %v384, %v382
    %v501 = vpack.c.b16 %v387, %v385
    %v502 = vpack.c.b16 %v388, %v386
    %v503 = vpack.c.b16 %v391, %v389
    %v504 = vpack.c.b16 %v392, %v390
    %v505 = vpack.c.b16 %v395, %v393
    %v506 = vpack.c.b16 %v396, %v394
    %v507 = vpack.c.b16 %v399, %v397
    %v508 = vpack.c.b16 %v400, %v398
    %v509 = vpack.c.b16 %v403, %v401
    %v510 = vpack.c.b16 %v404, %v402
    %v511 = vpack.c.b16 %v407, %v405
    %v512 = vpack.c.b16 %v408, %v406
    %v513 = vpack.c.b16 %v411, %v409
    %v514 = vpack.c.b16 %v412, %v410
    %v515 = vpack.c.b16 %v415, %v413
    %v516 = vpack.c.b16 %v416, %v414
    %v517 = vpack.c.b16 %v419, %v417
    %v518 = vpack.c.b16 %v420, %v418
    %v519 = vpack.c.b16 %v423, %v421
    %v520 = vpack.c.b16 %v424, %v422
    %v521 = vpack.c.b16 %v427, %v425
    %v522 = vpack.c.b16 %v428, %v426
    %v523 = vpack.c.b16 %v431, %v429
    %v524 = vpack.c.b16 %v432, %v430
    %v525 = vpack.c.b16 %v435, %v433
    %v526 = vpack.c.b16 %v436, %v434
    %v527 = vpack.c.b16 %v439, %v437
    %v528 = vpack.c.b16 %v440, %v438
    %v529 = vpack.c.b16 %v443, %v441
    %v530 = vpack.c.b16 %v444, %v442
    %v531 = vpack.c.b16 %v447, %v445
    %v532 = vpack.c.b16 %v448, %v446
    %v533 = vpack.c.b16 %v451, %v449
    %v534 = vpack.c.b16 %v452, %v450
    %v535 = vpack.c.b16 %v455, %v453
    %v536 = vpack.c.b16 %v456, %v454
    %v537 = vpack.c.b16 %v459, %v457
    %v538 = vpack.c.b16 %v460, %v458
    %v539 = vpack.c.b16 %v463, %v461
    %v540 = vpack.c.b16 %v464, %v462
    %v541 = vpack.c.b16 %v467, %v465
    %v542 = vpack.c.b16 %v468, %v466
    %v543 = vpack.c.b16 %v471, %v469
    %v544 = vpack.c.b16 %v472, %v470
    %v545 = vpack.c.b16 %v475, %v473
    %v546 = vpack.c.b16 %v476, %v474
    %v547 = vpack.c.b16 %v479, %v477
    %v548 = vpack.c.b16 %v480, %v478
    %v549 = vpack.c.b16 %v483, %v481
    %v550 = vpack.c.b16 %v484, %v482
    %v551 = vpack.c.b16 %v487, %v485
    %v552 = vpack.c.b16 %v488, %v486
    %617 = vmatprep.subr.bf16.mxu0 %v490
    %618 = vmatpush1.bf16.msra.mxu0 %v489
    %619 = vmatprep.subr.bf16.mxu0 %v492
    %620 = vmatpush1.bf16.msra.mxu0 %v491
    %621 = vmatprep.subr.bf16.mxu0 %v494
    %622 = vmatpush1.bf16.msra.mxu0 %v493
    %623 = vmatprep.subr.bf16.mxu0 %v496
    %624 = vmatpush1.bf16.msra.mxu0 %v495
    %625 = vmatprep.subr.bf16.mxu0 %v498
    %626 = vmatpush1.bf16.msra.mxu0 %v497
    %627 = vmatprep.subr.bf16.mxu0 %v500
    %628 = vmatpush1.bf16.msra.mxu0 %v499
    %629 = vmatprep.subr.bf16.mxu0 %v502
    %630 = vmatpush1.bf16.msra.mxu0 %v501
    %631 = vmatprep.subr.bf16.mxu0 %v504
    %632 = vmatpush1.bf16.msra.mxu0 %v503
    %633 = vmatprep.subr.bf16.mxu0 %v506
    %634 = vmatpush1.bf16.msra.mxu0 %v505
    %635 = vmatprep.subr.bf16.mxu0 %v508
    %636 = vmatpush1.bf16.msra.mxu0 %v507
    %637 = vmatprep.subr.bf16.mxu0 %v510
    %638 = vmatpush1.bf16.msra.mxu0 %v509
    %639 = vmatprep.subr.bf16.mxu0 %v512
    %640 = vmatpush1.bf16.msra.mxu0 %v511
    %641 = vmatprep.subr.bf16.mxu0 %v514
    %642 = vmatpush1.bf16.msra.mxu0 %v513
    %643 = vmatprep.subr.bf16.mxu0 %v516
    %644 = vmatpush1.bf16.msra.mxu0 %v515
    %645 = vmatprep.subr.bf16.mxu0 %v518
    %646 = vmatpush1.bf16.msra.mxu0 %v517
    %647 = vmatprep.subr.bf16.mxu0 %v520
    %648 = vmatpush1.bf16.msra.mxu0 %v519
    %649 = vmatprep.mubr.bf16.mxu0 %v219
    %650 = vmatmul.mubr.bf16.gmra.mrb[0].mxu0 %v218
    %v651 = vpop.f32.mrb[0].mxu0
    %v652 = vadd.f32 %v290, %v651
    %v653 = vpop.f32.mrb[0].mxu0
    %v654 = vadd.f32 %v294, %v653
    %v655 = vpop.f32.mrb[0].mxu0
    %v656 = vpop.f32.mrb[0].mxu0
    %657 = vdwg.mxu0
    %658 = vmatprep.subr.bf16.mxu0 %v522
    %659 = vmatpush1.bf16.msra.mxu0 %v521
    %660 = vmatprep.subr.bf16.mxu0 %v524
    %661 = vmatpush1.bf16.msra.mxu0 %v523
    %662 = vmatprep.subr.bf16.mxu0 %v526
    %663 = vmatpush1.bf16.msra.mxu0 %v525
    %664 = vmatprep.subr.bf16.mxu0 %v528
    %665 = vmatpush1.bf16.msra.mxu0 %v527
    %666 = vmatprep.subr.bf16.mxu0 %v530
    %667 = vmatpush1.bf16.msra.mxu0 %v529
    %668 = vmatprep.subr.bf16.mxu0 %v532
    %669 = vmatpush1.bf16.msra.mxu0 %v531
    %670 = vmatprep.subr.bf16.mxu0 %v534
    %671 = vmatpush1.bf16.msra.mxu0 %v533
    %672 = vmatprep.subr.bf16.mxu0 %v536
    %673 = vmatpush1.bf16.msra.mxu0 %v535
    %674 = vmatprep.subr.bf16.mxu0 %v538
    %675 = vmatpush1.bf16.msra.mxu0 %v537
    %676 = vmatprep.subr.bf16.mxu0 %v540
    %677 = vmatpush1.bf16.msra.mxu0 %v539
    %678 = vmatprep.subr.bf16.mxu0 %v542
    %679 = vmatpush1.bf16.msra.mxu0 %v541
    %680 = vmatprep.subr.bf16.mxu0 %v544
    %681 = vmatpush1.bf16.msra.mxu0 %v543
    %682 = vmatprep.subr.bf16.mxu0 %v546
    %683 = vmatpush1.bf16.msra.mxu0 %v545
    %684 = vmatprep.subr.bf16.mxu0 %v548
    %685 = vmatpush1.bf16.msra.mxu0 %v547
    %686 = vmatprep.subr.bf16.mxu0 %v550
    %687 = vmatpush1.bf16.msra.mxu0 %v549
    %688 = vmatprep.subr.bf16.mxu0 %v552
    %689 = vmatpush1.bf16.msra.mxu0 %v551
    %690 = vmatprep.mubr.bf16.mxu0 %v221
    %691 = vmatmul.mubr.bf16.gmra.mrb[0].mxu0 %v220
    %v692 = vpop.f32.mrb[0].mxu0
    %v693 = vadd.f32 %v652, %v692
    %v694 = vpop.f32.mrb[0].mxu0
    %v695 = vadd.f32 %v654, %v694
    %v696 = vpop.f32.mrb[0].mxu0
    %v697 = vpop.f32.mrb[0].mxu0
    %698 = vdwg.mxu0
    %v699 = vmax.f32 %v693, 0.0
    %v700 = vmax.f32 %v695, 0.0
    %v701 = vpack.c.bf16 %v699, %v699
    %v702 = vpack.c.bf16 %v700, %v700
    %v703 = vld [vmem:[#allocation5] sm:$0xff]
    %v704 = vld [vmem:[#allocation5 + $0x8] sm:$0xff]
    %v705 = vld [vmem:[#allocation5 + $0x10] sm:$0xf]
    %v706 = vld [vmem:[#allocation5 + $0x14] sm:$0xff]
    %v707 = vld [vmem:[#allocation5 + $0x1c] sm:$0xff]
    %v708 = vld [vmem:[#allocation5 + $0x24] sm:$0xf]
    %v709 = vld [vmem:[#allocation5 + $0x28] sm:$0xff]
    %v710 = vld [vmem:[#allocation5 + $0x30] sm:$0xff]
    %v711 = vld [vmem:[#allocation5 + $0x38] sm:$0xf]
    %v712 = vld [vmem:[#allocation5 + $0x3c] sm:$0xff]
    %v713 = vld [vmem:[#allocation5 + $0x44] sm:$0xff]
    %v714 = vld [vmem:[#allocation5 + $0x4c] sm:$0xf]
    %v715 = vld [vmem:[#allocation5 + $0x50] sm:$0xff]
    %v716 = vld [vmem:[#allocation5 + $0x58] sm:$0xff]
    %v717 = vld [vmem:[#allocation5 + $0x60] sm:$0xf]
    %v718 = vld [vmem:[#allocation5 + $0x64] sm:$0xff]
    %v719 = vld [vmem:[#allocation5 + $0x6c] sm:$0xff]
    %v720 = vld [vmem:[#allocation5 + $0x74] sm:$0xf]
    %v721 = vld [vmem:[#allocation5 + $0x78] sm:$0xff]
    %v722 = vld [vmem:[#allocation5 + $0x80] sm:$0xff]
    %v723 = vld [vmem:[#allocation5 + $0x88] sm:$0xf]
    %v724 = vld [vmem:[#allocation5 + $0x8c] sm:$0xff]
    %v725 = vld [vmem:[#allocation5 + $0x94] sm:$0xff]
    %v726 = vld [vmem:[#allocation5 + $0x9c] sm:$0xf]
    %v727 = vld [vmem:[#allocation5 + $0xa0] sm:$0xff]
    %v728 = vld [vmem:[#allocation5 + $0xa8] sm:$0xff]
    %v729 = vld [vmem:[#allocation5 + $0xb0] sm:$0xf]
    %v730 = vld [vmem:[#allocation5 + $0xb4] sm:$0xff]
    %v731 = vld [vmem:[#allocation5 + $0xbc] sm:$0xff]
    %v732 = vld [vmem:[#allocation5 + $0xc4] sm:$0xf]
    %v733 = vld [vmem:[#allocation5 + $0xc8] sm:$0xff]
    %v734 = vld [vmem:[#allocation5 + $0xd0] sm:$0xff]
    %v735 = vld [vmem:[#allocation5 + $0xd8] sm:$0xf]
    %v736 = vld [vmem:[#allocation5 + $0xdc] sm:$0xff]
    %v737 = vld [vmem:[#allocation5 + $0xe4] sm:$0xff]
    %v738 = vld [vmem:[#allocation5 + $0xec] sm:$0xf]
    %v739 = vld [vmem:[#allocation5 + $0xf0] sm:$0xff]
    %v740 = vld [vmem:[#allocation5 + $0xf8] sm:$0xff]
    %v741 = vld [vmem:[#allocation5 + $0x100] sm:$0xf]
    %v742 = vld [vmem:[#allocation5 + $0x104] sm:$0xff]
    %v743 = vld [vmem:[#allocation5 + $0x10c] sm:$0xff]
    %v744 = vld [vmem:[#allocation5 + $0x114] sm:$0xf]
    %v745 = vld [vmem:[#allocation5 + $0x118] sm:$0xff]
    %v746 = vld [vmem:[#allocation5 + $0x120] sm:$0xff]
    %v747 = vld [vmem:[#allocation5 + $0x128] sm:$0xf]
    %v748 = vld [vmem:[#allocation5 + $0x12c] sm:$0xff]
    %v749 = vld [vmem:[#allocation5 + $0x134] sm:$0xff]
    %v750 = vld [vmem:[#allocation5 + $0x13c] sm:$0xf]
    %v751 = vld [vmem:[#allocation5 + $0x140] sm:$0xff]
    %v752 = vld [vmem:[#allocation5 + $0x148] sm:$0xff]
    %v753 = vld [vmem:[#allocation5 + $0x150] sm:$0xf]
    %v754 = vld [vmem:[#allocation5 + $0x154] sm:$0xff]
    %v755 = vld [vmem:[#allocation5 + $0x15c] sm:$0xff]
    %v756 = vld [vmem:[#allocation5 + $0x164] sm:$0xf]
    %v757 = vld [vmem:[#allocation5 + $0x168] sm:$0xff]
    %v758 = vld [vmem:[#allocation5 + $0x170] sm:$0xff]
    %v759 = vld [vmem:[#allocation5 + $0x178] sm:$0xf]
    %v760 = vld [vmem:[#allocation5 + $0x17c] sm:$0xff]
    %v761 = vld [vmem:[#allocation5 + $0x184] sm:$0xff]
    %v762 = vld [vmem:[#allocation5 + $0x18c] sm:$0xf]
    %v763 = vld [vmem:[#allocation5 + $0x190] sm:$0xff]
    %v764 = vld [vmem:[#allocation5 + $0x198] sm:$0xff]
    %v765 = vld [vmem:[#allocation5 + $0x1a0] sm:$0xf]
    %v766 = vld [vmem:[#allocation5 + $0x1a4] sm:$0xff]
    %v767 = vld [vmem:[#allocation5 + $0x1ac] sm:$0xff]
    %v768 = vld [vmem:[#allocation5 + $0x1b4] sm:$0xf]
    %v769 = vld [vmem:[#allocation5 + $0x1b8] sm:$0xff]
    %v770 = vld [vmem:[#allocation5 + $0x1c0] sm:$0xff]
    %v771 = vld [vmem:[#allocation5 + $0x1c8] sm:$0xf]
    %v772 = vld [vmem:[#allocation5 + $0x1cc] sm:$0xff]
    %v773 = vld [vmem:[#allocation5 + $0x1d4] sm:$0xff]
    %v774 = vld [vmem:[#allocation5 + $0x1dc] sm:$0xf]
    %v775 = vld [vmem:[#allocation5 + $0x1e0] sm:$0xff]
    %v776 = vld [vmem:[#allocation5 + $0x1e8] sm:$0xff]
    %v777 = vld [vmem:[#allocation5 + $0x1f0] sm:$0xf]
    %v778 = vld [vmem:[#allocation5 + $0x1f4] sm:$0xff]
    %v779 = vld [vmem:[#allocation5 + $0x1fc] sm:$0xff]
    %v780 = vld [vmem:[#allocation5 + $0x204] sm:$0xf]
    %v781 = vld [vmem:[#allocation5 + $0x208] sm:$0xff]
    %v782 = vld [vmem:[#allocation5 + $0x210] sm:$0xff]
    %v783 = vld [vmem:[#allocation5 + $0x218] sm:$0xf]
    %v784 = vld [vmem:[#allocation5 + $0x21c] sm:$0xff]
    %v785 = vld [vmem:[#allocation5 + $0x224] sm:$0xff]
    %v786 = vld [vmem:[#allocation5 + $0x22c] sm:$0xf]
    %v787 = vld [vmem:[#allocation5 + $0x230] sm:$0xff]
    %v788 = vld [vmem:[#allocation5 + $0x238] sm:$0xff]
    %v789 = vld [vmem:[#allocation5 + $0x240] sm:$0xf]
    %v790 = vld [vmem:[#allocation5 + $0x244] sm:$0xff]
    %v791 = vld [vmem:[#allocation5 + $0x24c] sm:$0xff]
    %v792 = vld [vmem:[#allocation5 + $0x254] sm:$0xf]
    %v793 = vld [vmem:[#allocation5 + $0x258] sm:$0xff]
    %v794 = vld [vmem:[#allocation5 + $0x260] sm:$0xff]
    %v795 = vld [vmem:[#allocation5 + $0x268] sm:$0xf]
    %v796 = vld [vmem:[#allocation5 + $0x26c] sm:$0xff]
    %v797 = vld [vmem:[#allocation5 + $0x274] sm:$0xff]
    %v798 = vld [vmem:[#allocation5 + $0x27c] sm:$0xf]
    %v800 = vlaneseq
    %v801 = vshrl.u32 %v800, 7
    %v802 = vsub.s32 0, %v801
    %v803 = vrot.slane %v55, %v802
    %v804 = vlaneseq
    %v805 = vshrl.u32 %v804, 7
    %v806 = vsub.s32 1, %v805
    %v807 = vrot.slane %v55, %v806
    %v808 = vlaneseq
    %v809 = vshrl.u32 %v808, 7
    %v810 = vsub.s32 2, %v809
    %v811 = vrot.slane %v55, %v810
    %v812 = vlaneseq
    %v813 = vshrl.u32 %v812, 7
    %v814 = vsub.s32 3, %v813
    %v815 = vrot.slane %v55, %v814
    %v816 = vlaneseq
    %v817 = vshrl.u32 %v816, 7
    %v818 = vsub.s32 4, %v817
    %v819 = vrot.slane %v55, %v818
    %v921 = vunpack.c.l.b16 %v703
    %v922 = vunpack.c.h.b16 %v703
    %v923 = vunpack.c.l.b16 %v704
    %v924 = vunpack.c.h.b16 %v704
    %v925 = vunpack.c.l.b16 %v705
    %v926 = vunpack.c.l.b16 %v706
    %v927 = vunpack.c.h.b16 %v706
    %v928 = vunpack.c.l.b16 %v707
    %v929 = vunpack.c.h.b16 %v707
    %v930 = vunpack.c.l.b16 %v708
    %v931 = vunpack.c.l.b16 %v709
    %v932 = vunpack.c.h.b16 %v709
    %v933 = vunpack.c.l.b16 %v710
    %v934 = vunpack.c.h.b16 %v710
    %v935 = vunpack.c.l.b16 %v711
    %v936 = vunpack.c.l.b16 %v712
    %v937 = vunpack.c.h.b16 %v712
    %v938 = vunpack.c.l.b16 %v713
    %v939 = vunpack.c.h.b16 %v713
    %v940 = vunpack.c.l.b16 %v714
    %v941 = vunpack.c.l.b16 %v715
    %v942 = vunpack.c.h.b16 %v715
    %v943 = vunpack.c.l.b16 %v716
    %v944 = vunpack.c.h.b16 %v716
    %v945 = vunpack.c.l.b16 %v717
    %v946 = vunpack.c.l.b16 %v718
    %v947 = vunpack.c.h.b16 %v718
    %v948 = vunpack.c.l.b16 %v719
    %v949 = vunpack.c.h.b16 %v719
    %v950 = vunpack.c.l.b16 %v720
    %v951 = vunpack.c.l.b16 %v721
    %v952 = vunpack.c.h.b16 %v721
    %v953 = vunpack.c.l.b16 %v722
    %v954 = vunpack.c.h.b16 %v722
    %v955 = vunpack.c.l.b16 %v723
    %v956 = vunpack.c.l.b16 %v724
    %v957 = vunpack.c.h.b16 %v724
    %v958 = vunpack.c.l.b16 %v725
    %v959 = vunpack.c.h.b16 %v725
    %v960 = vunpack.c.l.b16 %v726
    %v961 = vunpack.c.l.b16 %v727
    %v962 = vunpack.c.h.b16 %v727
    %v963 = vunpack.c.l.b16 %v728
    %v964 = vunpack.c.h.b16 %v728
    %v965 = vunpack.c.l.b16 %v729
    %v966 = vunpack.c.l.b16 %v730
    %v967 = vunpack.c.h.b16 %v730
    %v968 = vunpack.c.l.b16 %v731
    %v969 = vunpack.c.h.b16 %v731
    %v970 = vunpack.c.l.b16 %v732
    %v971 = vunpack.c.l.b16 %v733
    %v972 = vunpack.c.h.b16 %v733
    %v973 = vunpack.c.l.b16 %v734
    %v974 = vunpack.c.h.b16 %v734
    %v975 = vunpack.c.l.b16 %v735
    %v976 = vunpack.c.l.b16 %v736
    %v977 = vunpack.c.h.b16 %v736
    %v978 = vunpack.c.l.b16 %v737
    %v979 = vunpack.c.h.b16 %v737
    %v980 = vunpack.c.l.b16 %v738
    %v981 = vunpack.c.l.b16 %v739
    %v982 = vunpack.c.h.b16 %v739
    %v983 = vunpack.c.l.b16 %v740
    %v984 = vunpack.c.h.b16 %v740
    %v985 = vunpack.c.l.b16 %v741
    %v986 = vunpack.c.l.b16 %v742
    %v987 = vunpack.c.h.b16 %v742
    %v988 = vunpack.c.l.b16 %v743
    %v989 = vunpack.c.h.b16 %v743
    %v990 = vunpack.c.l.b16 %v744
    %v991 = vunpack.c.l.b16 %v745
    %v992 = vunpack.c.h.b16 %v745
    %v993 = vunpack.c.l.b16 %v746
    %v994 = vunpack.c.h.b16 %v746
    %v995 = vunpack.c.l.b16 %v747
    %v996 = vunpack.c.l.b16 %v748
    %v997 = vunpack.c.h.b16 %v748
    %v998 = vunpack.c.l.b16 %v749
    %v999 = vunpack.c.h.b16 %v749
    %v1000 = vunpack.c.l.b16 %v750
    %v1001 = vunpack.c.l.b16 %v751
    %v1002 = vunpack.c.h.b16 %v751
    %v1003 = vunpack.c.l.b16 %v752
    %v1004 = vunpack.c.h.b16 %v752
    %v1005 = vunpack.c.l.b16 %v753
    %v1006 = vunpack.c.l.b16 %v754
    %v1007 = vunpack.c.h.b16 %v754
    %v1008 = vunpack.c.l.b16 %v755
    %v1009 = vunpack.c.h.b16 %v755
    %v1010 = vunpack.c.l.b16 %v756
    %v1011 = vunpack.c.l.b16 %v757
    %v1012 = vunpack.c.h.b16 %v757
    %v1013 = vunpack.c.l.b16 %v758
    %v1014 = vunpack.c.h.b16 %v758
    %v1015 = vunpack.c.l.b16 %v759
    %v1016 = vunpack.c.l.b16 %v760
    %v1017 = vunpack.c.h.b16 %v760
    %v1018 = vunpack.c.l.b16 %v761
    %v1019 = vunpack.c.h.b16 %v761
    %v1020 = vunpack.c.l.b16 %v762
    %v1021 = vunpack.c.l.b16 %v763
    %v1022 = vunpack.c.h.b16 %v763
    %v1023 = vunpack.c.l.b16 %v764
    %v1024 = vunpack.c.h.b16 %v764
    %v1025 = vunpack.c.l.b16 %v765
    %v1026 = vunpack.c.l.b16 %v766
    %v1027 = vunpack.c.h.b16 %v766
    %v1028 = vunpack.c.l.b16 %v767
    %v1029 = vunpack.c.h.b16 %v767
    %v1030 = vunpack.c.l.b16 %v768
    %v1031 = vunpack.c.l.b16 %v769
    %v1032 = vunpack.c.h.b16 %v769
    %v1033 = vunpack.c.l.b16 %v770
    %v1034 = vunpack.c.h.b16 %v770
    %v1035 = vunpack.c.l.b16 %v771
    %v1036 = vunpack.c.l.b16 %v772
    %v1037 = vunpack.c.h.b16 %v772
    %v1038 = vunpack.c.l.b16 %v773
    %v1039 = vunpack.c.h.b16 %v773
    %v1040 = vunpack.c.l.b16 %v774
    %v1041 = vunpack.c.l.b16 %v775
    %v1042 = vunpack.c.h.b16 %v775
    %v1043 = vunpack.c.l.b16 %v776
    %v1044 = vunpack.c.h.b16 %v776
    %v1045 = vunpack.c.l.b16 %v777
    %v1046 = vunpack.c.l.b16 %v778
    %v1047 = vunpack.c.h.b16 %v778
    %v1048 = vunpack.c.l.b16 %v779
    %v1049 = vunpack.c.h.b16 %v779
    %v1050 = vunpack.c.l.b16 %v780
    %v1051 = vunpack.c.l.b16 %v781
    %v1052 = vunpack.c.h.b16 %v781
    %v1053 = vunpack.c.l.b16 %v782
    %v1054 = vunpack.c.h.b16 %v782
    %v1055 = vunpack.c.l.b16 %v783
    %v1056 = vunpack.c.l.b16 %v784
    %v1057 = vunpack.c.h.b16 %v784
    %v1058 = vunpack.c.l.b16 %v785
    %v1059 = vunpack.c.h.b16 %v785
    %v1060 = vunpack.c.l.b16 %v786
    %v1061 = vunpack.c.l.b16 %v787
    %v1062 = vunpack.c.h.b16 %v787
    %v1063 = vunpack.c.l.b16 %v788
    %v1064 = vunpack.c.h.b16 %v788
    %v1065 = vunpack.c.l.b16 %v789
    %v1066 = vunpack.c.l.b16 %v790
    %v1067 = vunpack.c.h.b16 %v790
    %v1068 = vunpack.c.l.b16 %v791
    %v1069 = vunpack.c.h.b16 %v791
    %v1070 = vunpack.c.l.b16 %v792
    %v1071 = vunpack.c.l.b16 %v793
    %v1072 = vunpack.c.h.b16 %v793
    %v1073 = vunpack.c.l.b16 %v794
    %v1074 = vunpack.c.h.b16 %v794
    %v1075 = vunpack.c.l.b16 %v795
    %v1076 = vunpack.c.l.b16 %v796
    %v1077 = vunpack.c.h.b16 %v796
    %v1078 = vunpack.c.l.b16 %v797
    %v1079 = vunpack.c.h.b16 %v797
    %v1080 = vunpack.c.l.b16 %v798
    %v1081 = vpack.c.b16 %v926, %v921
    %v1082 = vpack.c.b16 %v927, %v922
    %v1083 = vpack.c.b16 %v928, %v923
    %v1084 = vpack.c.b16 %v929, %v924
    %v1085 = vpack.c.b16 %v930, %v925
    %v1086 = vpack.c.b16 %v936, %v931
    %v1087 = vpack.c.b16 %v937, %v932
    %v1088 = vpack.c.b16 %v938, %v933
    %v1089 = vpack.c.b16 %v939, %v934
    %v1090 = vpack.c.b16 %v940, %v935
    %v1091 = vpack.c.b16 %v946, %v941
    %v1092 = vpack.c.b16 %v947, %v942
    %v1093 = vpack.c.b16 %v948, %v943
    %v1094 = vpack.c.b16 %v949, %v944
    %v1095 = vpack.c.b16 %v950, %v945
    %v1096 = vpack.c.b16 %v956, %v951
    %v1097 = vpack.c.b16 %v957, %v952
    %v1098 = vpack.c.b16 %v958, %v953
    %v1099 = vpack.c.b16 %v959, %v954
    %v1100 = vpack.c.b16 %v960, %v955
    %v1101 = vpack.c.b16 %v966, %v961
    %v1102 = vpack.c.b16 %v967, %v962
    %v1103 = vpack.c.b16 %v968, %v963
    %v1104 = vpack.c.b16 %v969, %v964
    %v1105 = vpack.c.b16 %v970, %v965
    %v1106 = vpack.c.b16 %v976, %v971
    %v1107 = vpack.c.b16 %v977, %v972
    %v1108 = vpack.c.b16 %v978, %v973
    %v1109 = vpack.c.b16 %v979, %v974
    %v1110 = vpack.c.b16 %v980, %v975
    %v1111 = vpack.c.b16 %v986, %v981
    %v1112 = vpack.c.b16 %v987, %v982
    %v1113 = vpack.c.b16 %v988, %v983
    %v1114 = vpack.c.b16 %v989, %v984
    %v1115 = vpack.c.b16 %v990, %v985
    %v1116 = vpack.c.b16 %v996, %v991
    %v1117 = vpack.c.b16 %v997, %v992
    %v1118 = vpack.c.b16 %v998, %v993
    %v1119 = vpack.c.b16 %v999, %v994
    %v1120 = vpack.c.b16 %v1000, %v995
    %v1121 = vpack.c.b16 %v1006, %v1001
    %v1122 = vpack.c.b16 %v1007, %v1002
    %v1123 = vpack.c.b16 %v1008, %v1003
    %v1124 = vpack.c.b16 %v1009, %v1004
    %v1125 = vpack.c.b16 %v1010, %v1005
    %v1126 = vpack.c.b16 %v1016, %v1011
    %v1127 = vpack.c.b16 %v1017, %v1012
    %v1128 = vpack.c.b16 %v1018, %v1013
    %v1129 = vpack.c.b16 %v1019, %v1014
    %v1130 = vpack.c.b16 %v1020, %v1015
    %v1131 = vpack.c.b16 %v1026, %v1021
    %v1132 = vpack.c.b16 %v1027, %v1022
    %v1133 = vpack.c.b16 %v1028, %v1023
    %v1134 = vpack.c.b16 %v1029, %v1024
    %v1135 = vpack.c.b16 %v1030, %v1025
    %v1136 = vpack.c.b16 %v1036, %v1031
    %v1137 = vpack.c.b16 %v1037, %v1032
    %v1138 = vpack.c.b16 %v1038, %v1033
    %v1139 = vpack.c.b16 %v1039, %v1034
    %v1140 = vpack.c.b16 %v1040, %v1035
    %v1141 = vpack.c.b16 %v1046, %v1041
    %v1142 = vpack.c.b16 %v1047, %v1042
    %v1143 = vpack.c.b16 %v1048, %v1043
    %v1144 = vpack.c.b16 %v1049, %v1044
    %v1145 = vpack.c.b16 %v1050, %v1045
    %v1146 = vpack.c.b16 %v1056, %v1051
    %v1147 = vpack.c.b16 %v1057, %v1052
    %v1148 = vpack.c.b16 %v1058, %v1053
    %v1149 = vpack.c.b16 %v1059, %v1054
    %v1150 = vpack.c.b16 %v1060, %v1055
    %v1151 = vpack.c.b16 %v1066, %v1061
    %v1152 = vpack.c.b16 %v1067, %v1062
    %v1153 = vpack.c.b16 %v1068, %v1063
    %v1154 = vpack.c.b16 %v1069, %v1064
    %v1155 = vpack.c.b16 %v1070, %v1065
    %v1156 = vpack.c.b16 %v1076, %v1071
    %v1157 = vpack.c.b16 %v1077, %v1072
    %v1158 = vpack.c.b16 %v1078, %v1073
    %v1159 = vpack.c.b16 %v1079, %v1074
    %v1160 = vpack.c.b16 %v1080, %v1075
    %1241 = vmatprep.subr.bf16.mxu0 %v1082
    %1242 = vmatpush1.bf16.msra.mxu0 %v1081
    %1243 = vmatprep.subr.bf16.mxu0 %v1087
    %1244 = vmatpush1.bf16.msra.mxu0 %v1086
    %1245 = vmatprep.subr.bf16.mxu0 %v1092
    %1246 = vmatpush1.bf16.msra.mxu0 %v1091
    %1247 = vmatprep.subr.bf16.mxu0 %v1097
    %1248 = vmatpush1.bf16.msra.mxu0 %v1096
    %1249 = vmatprep.subr.bf16.mxu0 %v1102
    %1250 = vmatpush1.bf16.msra.mxu0 %v1101
    %1251 = vmatprep.subr.bf16.mxu0 %v1107
    %1252 = vmatpush1.bf16.msra.mxu0 %v1106
    %1253 = vmatprep.subr.bf16.mxu0 %v1112
    %1254 = vmatpush1.bf16.msra.mxu0 %v1111
    %1255 = vmatprep.subr.bf16.mxu0 %v1117
    %1256 = vmatpush1.bf16.msra.mxu0 %v1116
    %1257 = vmatprep.subr.bf16.mxu0 %v1122
    %1258 = vmatpush1.bf16.msra.mxu0 %v1121
    %1259 = vmatprep.subr.bf16.mxu0 %v1127
    %1260 = vmatpush1.bf16.msra.mxu0 %v1126
    %1261 = vmatprep.subr.bf16.mxu0 %v1132
    %1262 = vmatpush1.bf16.msra.mxu0 %v1131
    %1263 = vmatprep.subr.bf16.mxu0 %v1137
    %1264 = vmatpush1.bf16.msra.mxu0 %v1136
    %1265 = vmatprep.subr.bf16.mxu0 %v1142
    %1266 = vmatpush1.bf16.msra.mxu0 %v1141
    %1267 = vmatprep.subr.bf16.mxu0 %v1147
    %1268 = vmatpush1.bf16.msra.mxu0 %v1146
    %1269 = vmatprep.subr.bf16.mxu0 %v1152
    %1270 = vmatpush1.bf16.msra.mxu0 %v1151
    %1271 = vmatprep.subr.bf16.mxu0 %v1157
    %1272 = vmatpush1.bf16.msra.mxu0 %v1156
    %1273 = vmatprep.mubr.bf16.mxu0 %v702
    %1274 = vmatmul.mubr.bf16.gmra.mrb[0].mxu0 %v701
    %v1275 = vpop.f32.mrb[0].mxu0
    %v1276 = vadd.f32 %v803, %v1275
    %v1277 = vpop.f32.mrb[0].mxu0
    %v1278 = vadd.f32 %v807, %v1277
    %v1279 = vpop.f32.mrb[0].mxu0
    %v1280 = vpop.f32.mrb[0].mxu0
    %1281 = vdwg.mxu0
    %1282 = vmatprep.subr.bf16.mxu0 %v1084
    %1283 = vmatpush1.bf16.msra.mxu0 %v1083
    %1284 = vmatprep.subr.bf16.mxu0 %v1089
    %1285 = vmatpush1.bf16.msra.mxu0 %v1088
    %1286 = vmatprep.subr.bf16.mxu0 %v1094
    %1287 = vmatpush1.bf16.msra.mxu0 %v1093
    %1288 = vmatprep.subr.bf16.mxu0 %v1099
    %1289 = vmatpush1.bf16.msra.mxu0 %v1098
    %1290 = vmatprep.subr.bf16.mxu0 %v1104
    %1291 = vmatpush1.bf16.msra.mxu0 %v1103
    %1292 = vmatprep.subr.bf16.mxu0 %v1109
    %1293 = vmatpush1.bf16.msra.mxu0 %v1108
    %1294 = vmatprep.subr.bf16.mxu0 %v1114
    %1295 = vmatpush1.bf16.msra.mxu0 %v1113
    %1296 = vmatprep.subr.bf16.mxu0 %v1119
    %1297 = vmatpush1.bf16.msra.mxu0 %v1118
    %1298 = vmatprep.subr.bf16.mxu0 %v1124
    %1299 = vmatpush1.bf16.msra.mxu0 %v1123
    %1300 = vmatprep.subr.bf16.mxu0 %v1129
    %1301 = vmatpush1.bf16.msra.mxu0 %v1128
    %1302 = vmatprep.subr.bf16.mxu0 %v1134
    %1303 = vmatpush1.bf16.msra.mxu0 %v1133
    %1304 = vmatprep.subr.bf16.mxu0 %v1139
    %1305 = vmatpush1.bf16.msra.mxu0 %v1138
    %1306 = vmatprep.subr.bf16.mxu0 %v1144
    %1307 = vmatpush1.bf16.msra.mxu0 %v1143
    %1308 = vmatprep.subr.bf16.mxu0 %v1149
    %1309 = vmatpush1.bf16.msra.mxu0 %v1148
    %1310 = vmatprep.subr.bf16.mxu0 %v1154
    %1311 = vmatpush1.bf16.msra.mxu0 %v1153
    %1312 = vmatprep.subr.bf16.mxu0 %v1159
    %1313 = vmatpush1.bf16.msra.mxu0 %v1158
    %1314 = vmatprep.mubr.bf16.mxu0 %v702
    %1315 = vmatmul.mubr.bf16.gmra.mrb[0].mxu0 %v701
    %v1316 = vpop.f32.mrb[0].mxu0
    %v1317 = vadd.f32 %v811, %v1316
    %v1318 = vpop.f32.mrb[0].mxu0
    %v1319 = vadd.f32 %v815, %v1318
    %v1320 = vpop.f32.mrb[0].mxu0
    %v1321 = vpop.f32.mrb[0].mxu0
    %1322 = vdwg.mxu0
    %1323 = vmatprep.subr.bf16.mxu0 0
    %1324 = vmatpush1.bf16.msra.mxu0 %v1085
    %1325 = vmatprep.subr.bf16.mxu0 0
    %1326 = vmatpush1.bf16.msra.mxu0 %v1090
    %1327 = vmatprep.subr.bf16.mxu0 0
    %1328 = vmatpush1.bf16.msra.mxu0 %v1095
    %1329 = vmatprep.subr.bf16.mxu0 0
    %1330 = vmatpush1.bf16.msra.mxu0 %v1100
    %1331 = vmatprep.subr.bf16.mxu0 0
    %1332 = vmatpush1.bf16.msra.mxu0 %v1105
    %1333 = vmatprep.subr.bf16.mxu0 0
    %1334 = vmatpush1.bf16.msra.mxu0 %v1110
    %1335 = vmatprep.subr.bf16.mxu0 0
    %1336 = vmatpush1.bf16.msra.mxu0 %v1115
    %1337 = vmatprep.subr.bf16.mxu0 0
    %1338 = vmatpush1.bf16.msra.mxu0 %v1120
    %1339 = vmatprep.subr.bf16.mxu0 0
    %1340 = vmatpush1.bf16.msra.mxu0 %v1125
    %1341 = vmatprep.subr.bf16.mxu0 0
    %1342 = vmatpush1.bf16.msra.mxu0 %v1130
    %1343 = vmatprep.subr.bf16.mxu0 0
    %1344 = vmatpush1.bf16.msra.mxu0 %v1135
    %1345 = vmatprep.subr.bf16.mxu0 0
    %1346 = vmatpush1.bf16.msra.mxu0 %v1140
    %1347 = vmatprep.subr.bf16.mxu0 0
    %1348 = vmatpush1.bf16.msra.mxu0 %v1145
    %1349 = vmatprep.subr.bf16.mxu0 0
    %1350 = vmatpush1.bf16.msra.mxu0 %v1150
    %1351 = vmatprep.subr.bf16.mxu0 0
    %1352 = vmatpush1.bf16.msra.mxu0 %v1155
    %1353 = vmatprep.subr.bf16.mxu0 0
    %1354 = vmatpush1.bf16.msra.mxu0 %v1160
    %1355 = vmatprep.mubr.bf16.mxu0 %v702
    %1356 = vmatmul.mubr.bf16.gmra.mrb[0].mxu0 %v701
    %v1357 = vpop.f32.mrb[0].mxu0
    %v1358 = vadd.f32 %v819, %v1357
    %v1359 = vpop.f32.mrb[0].mxu0
    %v1360 = vpop.f32.mrb[0].mxu0
    %v1361 = vpop.f32.mrb[0].mxu0
    %1362 = vdwg.mxu0
    %v1363 = vmax.f32 %v1276, 0.0
    %v1364 = vmax.f32 %v1278, 0.0
    %v1365 = vmax.f32 %v1317, 0.0
    %v1366 = vmax.f32 %v1319, 0.0
    %v1367 = vmax.f32 %v1358, 0.0
    %v1368 = vpack.c.bf16 %v1363, %v1363
    %v1369 = vpack.c.bf16 %v1364, %v1364
    %v1370 = vpack.c.bf16 %v1365, %v1365
    %v1371 = vpack.c.bf16 %v1366, %v1366
    %v1372 = vpack.c.bf16 %v1367, %v1367
    %v1373 = vld [vmem:[%s4] sm:$0xf]
    %v1374 = vld [vmem:[%s4 + $0x4] sm:$0xf]
    %v1375 = vld [vmem:[%s4 + $0x8] sm:$0xf]
    %v1376 = vld [vmem:[%s4 + $0xc] sm:$0xf]
    %v1377 = vld [vmem:[%s4 + $0x10] sm:$0xf]
    %v1378 = vld [vmem:[%s4 + $0x14] sm:$0xf]
    %v1379 = vld [vmem:[%s4 + $0x18] sm:$0xf]
    %v1380 = vld [vmem:[%s4 + $0x1c] sm:$0xf]
    %v1381 = vld [vmem:[%s4 + $0x20] sm:$0xf]
    %v1382 = vld [vmem:[%s4 + $0x24] sm:$0xf]
    %v1383 = vld [vmem:[%s4 + $0x28] sm:$0xf]
    %v1384 = vld [vmem:[%s4 + $0x2c] sm:$0xf]
    %v1385 = vld [vmem:[%s4 + $0x30] sm:$0xf]
    %v1386 = vld [vmem:[%s4 + $0x34] sm:$0xf]
    %v1387 = vld [vmem:[%s4 + $0x38] sm:$0xf]
    %v1388 = vld [vmem:[%s4 + $0x3c] sm:$0xf]
    %v1389 = vld [vmem:[%s4 + $0x40] sm:$0xf]
    %v1390 = vld [vmem:[%s4 + $0x44] sm:$0xf]
    %v1391 = vld [vmem:[%s4 + $0x48] sm:$0xf]
    %v1392 = vld [vmem:[%s4 + $0x4c] sm:$0xf]
    %v1393 = vld [vmem:[%s4 + $0x50] sm:$0xf]
    %v1394 = vld [vmem:[%s4 + $0x54] sm:$0xf]
    %v1395 = vld [vmem:[%s4 + $0x58] sm:$0xf]
    %v1396 = vld [vmem:[%s4 + $0x5c] sm:$0xf]
    %v1397 = vld [vmem:[%s4 + $0x60] sm:$0xf]
    %v1398 = vld [vmem:[%s4 + $0x64] sm:$0xf]
    %v1399 = vld [vmem:[%s4 + $0x68] sm:$0xf]
    %v1400 = vld [vmem:[%s4 + $0x6c] sm:$0xf]
    %v1401 = vld [vmem:[%s4 + $0x70] sm:$0xf]
    %v1402 = vld [vmem:[%s4 + $0x74] sm:$0xf]
    %v1403 = vld [vmem:[%s4 + $0x78] sm:$0xf]
    %v1404 = vld [vmem:[%s4 + $0x7c] sm:$0xf]
    %v1405 = vld [vmem:[%s4 + $0x80] sm:$0xf]
    %v1406 = vld [vmem:[%s4 + $0x84] sm:$0xf]
    %v1407 = vld [vmem:[%s4 + $0x88] sm:$0xf]
    %v1408 = vld [vmem:[%s4 + $0x8c] sm:$0xf]
    %v1409 = vld [vmem:[%s4 + $0x90] sm:$0xf]
    %v1410 = vld [vmem:[%s4 + $0x94] sm:$0xf]
    %v1411 = vld [vmem:[%s4 + $0x98] sm:$0xf]
    %v1412 = vld [vmem:[%s4 + $0x9c] sm:$0xf]
    %v1413 = vld [vmem:[%s4 + $0xa0] sm:$0xf]
    %v1414 = vld [vmem:[%s4 + $0xa4] sm:$0xf]
    %v1415 = vld [vmem:[%s4 + $0xa8] sm:$0xf]
    %v1416 = vld [vmem:[%s4 + $0xac] sm:$0xf]
    %v1417 = vld [vmem:[%s4 + $0xb0] sm:$0xf]
    %v1418 = vld [vmem:[%s4 + $0xb4] sm:$0xf]
    %v1419 = vld [vmem:[%s4 + $0xb8] sm:$0xf]
    %v1420 = vld [vmem:[%s4 + $0xbc] sm:$0xf]
    %v1421 = vld [vmem:[%s4 + $0xc0] sm:$0xf]
    %v1422 = vld [vmem:[%s4 + $0xc4] sm:$0xf]
    %v1423 = vld [vmem:[%s4 + $0xc8] sm:$0xf]
    %v1424 = vld [vmem:[%s4 + $0xcc] sm:$0xf]
    %v1425 = vld [vmem:[%s4 + $0xd0] sm:$0xf]
    %v1426 = vld [vmem:[%s4 + $0xd4] sm:$0xf]
    %v1427 = vld [vmem:[%s4 + $0xd8] sm:$0xf]
    %v1428 = vld [vmem:[%s4 + $0xdc] sm:$0xf]
    %v1429 = vld [vmem:[%s4 + $0xe0] sm:$0xf]
    %v1430 = vld [vmem:[%s4 + $0xe4] sm:$0xf]
    %v1431 = vld [vmem:[%s4 + $0xe8] sm:$0xf]
    %v1432 = vld [vmem:[%s4 + $0xec] sm:$0xf]
    %v1433 = vld [vmem:[%s4 + $0xf0] sm:$0xf]
    %v1434 = vld [vmem:[%s4 + $0xf4] sm:$0xf]
    %v1435 = vld [vmem:[%s4 + $0xf8] sm:$0xf]
    %v1436 = vld [vmem:[%s4 + $0xfc] sm:$0xf]
    %v1437 = vld [vmem:[%s4 + $0x100] sm:$0xf]
    %v1438 = vld [vmem:[%s4 + $0x104] sm:$0xf]
    %v1439 = vld [vmem:[%s4 + $0x108] sm:$0xf]
    %v1440 = vld [vmem:[%s4 + $0x10c] sm:$0xf]
    %v1441 = vld [vmem:[%s4 + $0x110] sm:$0xf]
    %v1442 = vld [vmem:[%s4 + $0x114] sm:$0xf]
    %v1443 = vld [vmem:[%s4 + $0x118] sm:$0xf]
    %v1444 = vld [vmem:[%s4 + $0x11c] sm:$0xf]
    %v1445 = vld [vmem:[%s4 + $0x120] sm:$0xf]
    %v1446 = vld [vmem:[%s4 + $0x124] sm:$0xf]
    %v1447 = vld [vmem:[%s4 + $0x128] sm:$0xf]
    %v1448 = vld [vmem:[%s4 + $0x12c] sm:$0xf]
    %v1449 = vld [vmem:[%s4 + $0x130] sm:$0xf]
    %v1450 = vld [vmem:[%s4 + $0x134] sm:$0xf]
    %v1451 = vld [vmem:[%s4 + $0x138] sm:$0xf]
    %v1452 = vld [vmem:[%s4 + $0x13c] sm:$0xf]
    %v1454 = vlaneseq
    %v1455 = vshrl.u32 %v1454, 7
    %v1456 = vsub.s32 0, %v1455
    %v1457 = vrot.slane %v56, %v1456
    %v1539 = vunpack.c.l.b16 %v1373
    %v1540 = vunpack.c.l.b16 %v1374
    %v1541 = vunpack.c.l.b16 %v1375
    %v1542 = vunpack.c.l.b16 %v1376
    %v1543 = vunpack.c.l.b16 %v1377
    %v1544 = vunpack.c.l.b16 %v1378
    %v1545 = vunpack.c.l.b16 %v1379
    %v1546 = vunpack.c.l.b16 %v1380
    %v1547 = vunpack.c.l.b16 %v1381
    %v1548 = vunpack.c.l.b16 %v1382
    %v1549 = vunpack.c.l.b16 %v1383
    %v1550 = vunpack.c.l.b16 %v1384
    %v1551 = vunpack.c.l.b16 %v1385
    %v1552 = vunpack.c.l.b16 %v1386
    %v1553 = vunpack.c.l.b16 %v1387
    %v1554 = vunpack.c.l.b16 %v1388
    %v1555 = vunpack.c.l.b16 %v1389
    %v1556 = vunpack.c.l.b16 %v1390
    %v1557 = vunpack.c.l.b16 %v1391
    %v1558 = vunpack.c.l.b16 %v1392
    %v1559 = vunpack.c.l.b16 %v1393
    %v1560 = vunpack.c.l.b16 %v1394
    %v1561 = vunpack.c.l.b16 %v1395
    %v1562 = vunpack.c.l.b16 %v1396
    %v1563 = vunpack.c.l.b16 %v1397
    %v1564 = vunpack.c.l.b16 %v1398
    %v1565 = vunpack.c.l.b16 %v1399
    %v1566 = vunpack.c.l.b16 %v1400
    %v1567 = vunpack.c.l.b16 %v1401
    %v1568 = vunpack.c.l.b16 %v1402
    %v1569 = vunpack.c.l.b16 %v1403
    %v1570 = vunpack.c.l.b16 %v1404
    %v1571 = vunpack.c.l.b16 %v1405
    %v1572 = vunpack.c.l.b16 %v1406
    %v1573 = vunpack.c.l.b16 %v1407
    %v1574 = vunpack.c.l.b16 %v1408
    %v1575 = vunpack.c.l.b16 %v1409
    %v1576 = vunpack.c.l.b16 %v1410
    %v1577 = vunpack.c.l.b16 %v1411
    %v1578 = vunpack.c.l.b16 %v1412
    %v1579 = vunpack.c.l.b16 %v1413
    %v1580 = vunpack.c.l.b16 %v1414
    %v1581 = vunpack.c.l.b16 %v1415
    %v1582 = vunpack.c.l.b16 %v1416
    %v1583 = vunpack.c.l.b16 %v1417
    %v1584 = vunpack.c.l.b16 %v1418
    %v1585 = vunpack.c.l.b16 %v1419
    %v1586 = vunpack.c.l.b16 %v1420
    %v1587 = vunpack.c.l.b16 %v1421
    %v1588 = vunpack.c.l.b16 %v1422
    %v1589 = vunpack.c.l.b16 %v1423
    %v1590 = vunpack.c.l.b16 %v1424
    %v1591 = vunpack.c.l.b16 %v1425
    %v1592 = vunpack.c.l.b16 %v1426
    %v1593 = vunpack.c.l.b16 %v1427
    %v1594 = vunpack.c.l.b16 %v1428
    %v1595 = vunpack.c.l.b16 %v1429
    %v1596 = vunpack.c.l.b16 %v1430
    %v1597 = vunpack.c.l.b16 %v1431
    %v1598 = vunpack.c.l.b16 %v1432
    %v1599 = vunpack.c.l.b16 %v1433
    %v1600 = vunpack.c.l.b16 %v1434
    %v1601 = vunpack.c.l.b16 %v1435
    %v1602 = vunpack.c.l.b16 %v1436
    %v1603 = vunpack.c.l.b16 %v1437
    %v1604 = vunpack.c.l.b16 %v1438
    %v1605 = vunpack.c.l.b16 %v1439
    %v1606 = vunpack.c.l.b16 %v1440
    %v1607 = vunpack.c.l.b16 %v1441
    %v1608 = vunpack.c.l.b16 %v1442
    %v1609 = vunpack.c.l.b16 %v1443
    %v1610 = vunpack.c.l.b16 %v1444
    %v1611 = vunpack.c.l.b16 %v1445
    %v1612 = vunpack.c.l.b16 %v1446
    %v1613 = vunpack.c.l.b16 %v1447
    %v1614 = vunpack.c.l.b16 %v1448
    %v1615 = vunpack.c.l.b16 %v1449
    %v1616 = vunpack.c.l.b16 %v1450
    %v1617 = vunpack.c.l.b16 %v1451
    %v1618 = vunpack.c.l.b16 %v1452
    %v1619 = vpack.c.b16 %v1540, %v1539
    %v1620 = vpack.c.b16 %v1542, %v1541
    %v1621 = vpack.c.b16 %v1544, %v1543
    %v1622 = vpack.c.b16 %v1546, %v1545
    %v1623 = vpack.c.b16 %v1548, %v1547
    %v1624 = vpack.c.b16 %v1550, %v1549
    %v1625 = vpack.c.b16 %v1552, %v1551
    %v1626 = vpack.c.b16 %v1554, %v1553
    %v1627 = vpack.c.b16 %v1556, %v1555
    %v1628 = vpack.c.b16 %v1558, %v1557
    %v1629 = vpack.c.b16 %v1560, %v1559
    %v1630 = vpack.c.b16 %v1562, %v1561
    %v1631 = vpack.c.b16 %v1564, %v1563
    %v1632 = vpack.c.b16 %v1566, %v1565
    %v1633 = vpack.c.b16 %v1568, %v1567
    %v1634 = vpack.c.b16 %v1570, %v1569
    %v1635 = vpack.c.b16 %v1572, %v1571
    %v1636 = vpack.c.b16 %v1574, %v1573
    %v1637 = vpack.c.b16 %v1576, %v1575
    %v1638 = vpack.c.b16 %v1578, %v1577
    %v1639 = vpack.c.b16 %v1580, %v1579
    %v1640 = vpack.c.b16 %v1582, %v1581
    %v1641 = vpack.c.b16 %v1584, %v1583
    %v1642 = vpack.c.b16 %v1586, %v1585
    %v1643 = vpack.c.b16 %v1588, %v1587
    %v1644 = vpack.c.b16 %v1590, %v1589
    %v1645 = vpack.c.b16 %v1592, %v1591
    %v1646 = vpack.c.b16 %v1594, %v1593
    %v1647 = vpack.c.b16 %v1596, %v1595
    %v1648 = vpack.c.b16 %v1598, %v1597
    %v1649 = vpack.c.b16 %v1600, %v1599
    %v1650 = vpack.c.b16 %v1602, %v1601
    %v1651 = vpack.c.b16 %v1604, %v1603
    %v1652 = vpack.c.b16 %v1606, %v1605
    %v1653 = vpack.c.b16 %v1608, %v1607
    %v1654 = vpack.c.b16 %v1610, %v1609
    %v1655 = vpack.c.b16 %v1612, %v1611
    %v1656 = vpack.c.b16 %v1614, %v1613
    %v1657 = vpack.c.b16 %v1616, %v1615
    %v1658 = vpack.c.b16 %v1618, %v1617
    %1699 = vmatprep.subr.bf16.mxu0 0
    %1700 = vmatpush1.bf16.msra.mxu0 %v1619
    %1701 = vmatprep.subr.bf16.mxu0 0
    %1702 = vmatpush1.bf16.msra.mxu0 %v1620
    %1703 = vmatprep.subr.bf16.mxu0 0
    %1704 = vmatpush1.bf16.msra.mxu0 %v1621
    %1705 = vmatprep.subr.bf16.mxu0 0
    %1706 = vmatpush1.bf16.msra.mxu0 %v1622
    %1707 = vmatprep.subr.bf16.mxu0 0
    %1708 = vmatpush1.bf16.msra.mxu0 %v1623
    %1709 = vmatprep.subr.bf16.mxu0 0
    %1710 = vmatpush1.bf16.msra.mxu0 %v1624
    %1711 = vmatprep.subr.bf16.mxu0 0
    %1712 = vmatpush1.bf16.msra.mxu0 %v1625
    %1713 = vmatprep.subr.bf16.mxu0 0
    %1714 = vmatpush1.bf16.msra.mxu0 %v1626
    %1715 = vmatprep.subr.bf16.mxu0 0
    %1716 = vmatpush1.bf16.msra.mxu0 %v1627
    %1717 = vmatprep.subr.bf16.mxu0 0
    %1718 = vmatpush1.bf16.msra.mxu0 %v1628
    %1719 = vmatprep.subr.bf16.mxu0 0
    %1720 = vmatpush1.bf16.msra.mxu0 %v1629
    %1721 = vmatprep.subr.bf16.mxu0 0
    %1722 = vmatpush1.bf16.msra.mxu0 %v1630
    %1723 = vmatprep.subr.bf16.mxu0 0
    %1724 = vmatpush1.bf16.msra.mxu0 %v1631
    %1725 = vmatprep.subr.bf16.mxu0 0
    %1726 = vmatpush1.bf16.msra.mxu0 %v1632
    %1727 = vmatprep.subr.bf16.mxu0 0
    %1728 = vmatpush1.bf16.msra.mxu0 %v1633
    %1729 = vmatprep.subr.bf16.mxu0 0
    %1730 = vmatpush1.bf16.msra.mxu0 %v1634
    %1731 = vmatprep.mubr.bf16.mxu0 %v1369
    %1732 = vmatmul.mubr.bf16.gmra.mrb[0].mxu0 %v1368
    %v1733 = vpop.f32.mrb[0].mxu0
    %v1734 = vadd.f32 %v1457, %v1733
    %v1735 = vpop.f32.mrb[0].mxu0
    %v1736 = vpop.f32.mrb[0].mxu0
    %v1737 = vpop.f32.mrb[0].mxu0
    %1738 = vdwg.mxu0
    %1739 = vmatprep.subr.bf16.mxu0 0
    %1740 = vmatpush1.bf16.msra.mxu0 %v1635
    %1741 = vmatprep.subr.bf16.mxu0 0
    %1742 = vmatpush1.bf16.msra.mxu0 %v1636
    %1743 = vmatprep.subr.bf16.mxu0 0
    %1744 = vmatpush1.bf16.msra.mxu0 %v1637
    %1745 = vmatprep.subr.bf16.mxu0 0
    %1746 = vmatpush1.bf16.msra.mxu0 %v1638
    %1747 = vmatprep.subr.bf16.mxu0 0
    %1748 = vmatpush1.bf16.msra.mxu0 %v1639
    %1749 = vmatprep.subr.bf16.mxu0 0
    %1750 = vmatpush1.bf16.msra.mxu0 %v1640
    %1751 = vmatprep.subr.bf16.mxu0 0
    %1752 = vmatpush1.bf16.msra.mxu0 %v1641
    %1753 = vmatprep.subr.bf16.mxu0 0
    %1754 = vmatpush1.bf16.msra.mxu0 %v1642
    %1755 = vmatprep.subr.bf16.mxu0 0
    %1756 = vmatpush1.bf16.msra.mxu0 %v1643
    %1757 = vmatprep.subr.bf16.mxu0 0
    %1758 = vmatpush1.bf16.msra.mxu0 %v1644
    %1759 = vmatprep.subr.bf16.mxu0 0
    %1760 = vmatpush1.bf16.msra.mxu0 %v1645
    %1761 = vmatprep.subr.bf16.mxu0 0
    %1762 = vmatpush1.bf16.msra.mxu0 %v1646
    %1763 = vmatprep.subr.bf16.mxu0 0
    %1764 = vmatpush1.bf16.msra.mxu0 %v1647
    %1765 = vmatprep.subr.bf16.mxu0 0
    %1766 = vmatpush1.bf16.msra.mxu0 %v1648
    %1767 = vmatprep.subr.bf16.mxu0 0
    %1768 = vmatpush1.bf16.msra.mxu0 %v1649
    %1769 = vmatprep.subr.bf16.mxu0 0
    %1770 = vmatpush1.bf16.msra.mxu0 %v1650
    %1771 = vmatprep.mubr.bf16.mxu0 %v1371
    %1772 = vmatmul.mubr.bf16.gmra.mrb[0].mxu0 %v1370
    %v1773 = vpop.f32.mrb[0].mxu0
    %v1774 = vadd.f32 %v1734, %v1773
    %v1775 = vpop.f32.mrb[0].mxu0
    %v1776 = vpop.f32.mrb[0].mxu0
    %v1777 = vpop.f32.mrb[0].mxu0
    %1778 = vdwg.mxu0
    %1779 = vmatprep.subr.bf16.mxu0 0
    %1780 = vmatpush1.bf16.msra.mxu0 %v1651
    %1781 = vmatprep.subr.bf16.mxu0 0
    %1782 = vmatpush1.bf16.msra.mxu0 %v1652
    %1783 = vmatprep.subr.bf16.mxu0 0
    %1784 = vmatpush1.bf16.msra.mxu0 %v1653
    %1785 = vmatprep.subr.bf16.mxu0 0
    %1786 = vmatpush1.bf16.msra.mxu0 %v1654
    %1787 = vmatprep.subr.bf16.mxu0 0
    %1788 = vmatpush1.bf16.msra.mxu0 %v1655
    %1789 = vmatprep.subr.bf16.mxu0 0
    %1790 = vmatpush1.bf16.msra.mxu0 %v1656
    %1791 = vmatprep.subr.bf16.mxu0 0
    %1792 = vmatpush1.bf16.msra.mxu0 %v1657
    %1793 = vmatprep.subr.bf16.mxu0 0
    %1794 = vmatpush1.bf16.msra.mxu0 %v1658
    %1795 = vmatprep.subr.bf16.mxu0 0
    %1796 = vmatpush1.bf16.msra.mxu0 0
    %1797 = vmatprep.subr.bf16.mxu0 0
    %1798 = vmatpush1.bf16.msra.mxu0 0
    %1799 = vmatprep.subr.bf16.mxu0 0
    %1800 = vmatpush1.bf16.msra.mxu0 0
    %1801 = vmatprep.subr.bf16.mxu0 0
    %1802 = vmatpush1.bf16.msra.mxu0 0
    %1803 = vmatprep.subr.bf16.mxu0 0
    %1804 = vmatpush1.bf16.msra.mxu0 0
    %1805 = vmatprep.subr.bf16.mxu0 0
    %1806 = vmatpush1.bf16.msra.mxu0 0
    %1807 = vmatprep.subr.bf16.mxu0 0
    %1808 = vmatpush1.bf16.msra.mxu0 0
    %1809 = vmatprep.subr.bf16.mxu0 0
    %1810 = vmatpush1.bf16.msra.mxu0 0
    %1811 = vmatprep.mubr.bf16.mxu0 0
    %1812 = vmatmul.mubr.bf16.gmra.mrb[0].mxu0 %v1372
    %v1813 = vpop.f32.mrb[0].mxu0
    %v1814 = vadd.f32 %v1774, %v1813
    %v1815 = vpop.f32.mrb[0].mxu0
    %v1816 = vpop.f32.mrb[0].mxu0
    %v1817 = vpop.f32.mrb[0].mxu0
    %1818 = vdwg.mxu0
    %1819 = vst.msk [vmem:[#allocation7] sm:$0xff] %vm128, %v1814
    // Predicated region
    $region34: #{tpu_custom_call.1} parent=1 // pred_check
      _
    $region35: #{tpu_custom_call.1} parent=1 // pred_check_branch
      %1821 = sbr.rel (0) target = $region37
    $region36: #{tpu_custom_call.1} parent=1 // pred_region
      %s1823 = ssub.s32 128, 128
      %1824 = vsyncadd [#allocation4], %s1823
      %s1826 = sshll.u32 [#allocation7], 4
      %s1827 = int_to_ptr.vmem [resolvable:$true] %s1826
      %1829 = dma.vmem_to_hbm [thread:$0]  %s1827, 128, %s6, [#allocation4]
    $region37: #{tpu_custom_call.1} parent=1 // pred_fallthru
      _
    // Predicated region
    $region38: #{tpu_custom_call.1} parent=1 // pred_check
      _
    $region39: #{tpu_custom_call.1} parent=1 // pred_check_branch
      %1831 = sbr.rel (0) target = $region41
    $region40: #{tpu_custom_call.1} parent=1 // pred_region
      %1832 = dma.done [#allocation4], 128
    $region41: #{tpu_custom_call.1} parent=1 // pred_fallthru
      _
    %1833 = vsyncpa [#allocation3], 1
    %1834 = vsyncpa [#allocation6], 1
    %1835 = vsyncpa [#allocation4], 1

</llo_original>
